<compile_context>
chip_gen: v7x
topology: tpu7x:2x2x1
jax: 0.10.0
libtpu: 0.0.40
codegen_flags: <defaults>
</compile_context>

<pallas_src>
import functools

import jax
import jax.numpy as jnp
from jax import lax
from jax.experimental import pallas as pl
from jax.experimental.pallas import tpu as pltpu


_BN_EPS = 0.001            # nn.BatchNorm1d(..., eps=0.001) in the reference
_MXU_DTYPE = jnp.bfloat16  # MXU operand dtype (f32 accumulation everywhere)
_NEG_BIG = -1e30           # finite "-inf" so padded-tile corner cases stay NaN-free


def _softplus(v):
    # Numerically stable softplus: max(v,0) + log(1 + exp(-|v|)).
    return jnp.maximum(v, 0.0) + jnp.log(1.0 + jnp.exp(-jnp.abs(v)))


def _batchnorm_train(v, eps=_BN_EPS):
    # BatchNorm1d, training mode, gamma=1 / beta=0, biased batch variance.
    m = jnp.mean(v, axis=0, keepdims=True)
    var = jnp.mean((v - m) * (v - m), axis=0, keepdims=True)
    return (v - m) * lax.rsqrt(var + eps)


# --------------------------------------------------------------------------- #
# Kernel 1: streamed x @ W11, per-core partial accumulation.
# --------------------------------------------------------------------------- #
def _xw11_partial_kernel(x_ref, w_ref, out_ref):
    t = pl.program_id(1)

    @pl.when(t == 0)
    def _():
        out_ref[...] = jnp.zeros(out_ref.shape, out_ref.dtype)

    w = w_ref[...]
    if w.dtype != _MXU_DTYPE:                      # int8 -> f32 -> bf16 dequant
        w = w.astype(jnp.float32).astype(_MXU_DTYPE)
    out_ref[...] += jnp.dot(x_ref[...], w, preferred_element_type=jnp.float32)


# --------------------------------------------------------------------------- #
# Kernel 2: encoder tail (tiny; everything resident in VMEM, no grid).
# --------------------------------------------------------------------------- #
def _encoder_tail_kernel(
    acc_ref, b11_ref, w12_ref, b12_ref, w2c_ref, b2c_ref,
    mu2_ref, inv_var2_ref, log_var2_ref,
    eps_ref, drop1_ref, dropt_ref,
    ntheta_ref, kld_ref,
    *, num_topics, k_pad,
):
    e1 = _softplus(acc_ref[...] + b11_ref[...])
    e1 = _softplus(
        jnp.dot(e1.astype(_MXU_DTYPE), w12_ref[...],
                preferred_element_type=jnp.float32) + b12_ref[...])
    e1 = e1 * drop1_ref[...]                 # fc1_drop, mask pre-scaled by 1/(1-p)

    # Fused fc21|fc22 head, padded so the mu/logvar split is 128-lane aligned.
    h = jnp.dot(e1.astype(_MXU_DTYPE), w2c_ref[...],
                preferred_element_type=jnp.float32) + b2c_ref[...]
    h = _batchnorm_train(h)                  # per-column BN == two separate BNs
    mu = h[:, :num_topics]
    logvar = h[:, k_pad:k_pad + num_topics]

    # Reparameterize + theta. The EUP approximate reciprocal's uniform per-row
    # scale error cancels exactly under the L2 normalization below.
    z = mu + eps_ref[...] * jnp.exp(0.5 * logvar)
    z = z - jnp.max(z, axis=1, keepdims=True)
    ez = jnp.exp(z)
    theta = ez * pl.reciprocal(jnp.sum(ez, axis=1, keepdims=True), approx=True)
    theta = theta * dropt_ref[...]           # theta_drop

    inv_n = lax.rsqrt(
        jnp.maximum(jnp.sum(theta * theta, axis=1, keepdims=True), 1e-24))
    ntheta_ref[...] = theta * inv_n          # F.normalize(theta, dim=1)

    # Analytic KLD against the logistic-normal prior (1/var2, log(var2) are
    # precomputed constants).
    var = jnp.exp(logvar)
    diff = mu - mu2_ref[...]
    inv_var2 = inv_var2_ref[...]
    kld_ref[...] = 0.5 * (
        jnp.sum(var * inv_var2 + diff * diff * inv_var2
                + log_var2_ref[...] - logvar, axis=1, keepdims=True)
        - jnp.float32(num_topics))


# --------------------------------------------------------------------------- #
# Kernel 3: streamed decode + online log-softmax, per-core partial stats.
# --------------------------------------------------------------------------- #
def _decoder_kernel(
    x_ref, beta_ref, nt_ref, mean_nt_ref,
    stats_ref,
    m_ref, l_ref, xs_ref, xsum_ref,
    *, v_true, tile_v, tiles_per_core,
):
    c = pl.program_id(0)
    t = pl.program_id(1)

    @pl.when(t == 0)
    def _():
        m_ref[...] = jnp.full(m_ref.shape, _NEG_BIG, m_ref.dtype)
        l_ref[...] = jnp.zeros(l_ref.shape, l_ref.dtype)
        xs_ref[...] = jnp.zeros(xs_ref.shape, xs_ref.dtype)
        xsum_ref[...] = jnp.zeros(xsum_ref.shape, xsum_ref.dtype)

    # F.normalize(beta, dim=0): each vocab column lives entirely in this tile.
    # (Per-vocab-column int8 scales cancel exactly under this L2 norm.)
    beta = beta_ref[...].astype(jnp.float32)
    inv_col = lax.rsqrt(
        jnp.maximum(jnp.sum(beta * beta, axis=0, keepdims=True), 1e-24))
    norm_beta = (beta * inv_col).astype(_MXU_DTYPE)

    logits = jnp.dot(nt_ref[...], norm_beta, preferred_element_type=jnp.float32)

    # decoder_bn (training stats), folded to a per-column scale/shift in ONE
    # pass: column mean via mean_b(theta) @ norm_beta on the MXU, variance from
    # E[s^2] - mean^2.
    col_mean = jnp.dot(mean_nt_ref[...], norm_beta,
                       preferred_element_type=jnp.float32)          # (1, tv)
    col_msq = jnp.mean(logits * logits, axis=0, keepdims=True)       # (1, tv)
    var = jnp.maximum(col_msq - col_mean * col_mean, 0.0)
    s = (logits - col_mean) * lax.rsqrt(var + _BN_EPS)

    # Mask vocab-padding columns out of the logsumexp (x is zero-padded there,
    # so the x*s / sum(x) accumulators need no mask).
    col0 = (c * tiles_per_core + t) * tile_v
    col_idx = col0 + lax.broadcasted_iota(jnp.int32, (1, tile_v), 1)
    s_lse = jnp.where(col_idx < v_true, s, _NEG_BIG)

    # Online log-softmax over the vocab axis:
    #   recon_loss_b = sum_v(x) * logsumexp_v(s) - sum_v(x * s)
    m_new = jnp.maximum(m_ref[...], jnp.max(s_lse, axis=1, keepdims=True))
    alpha = jnp.exp(m_ref[...] - m_new)
    l_ref[...] = l_ref[...] * alpha + jnp.sum(jnp.exp(s_lse - m_new),
                                              axis=1, keepdims=True)
    m_ref[...] = m_new
    x = x_ref[...]                                           # bf16, promotes to f32
    xs_ref[...] += jnp.sum(x * s, axis=1, keepdims=True)
    xsum_ref[...] += jnp.sum(x.astype(jnp.float32), axis=1, keepdims=True)

    @pl.when(t == pl.num_programs(1) - 1)
    def _():
        stats_ref[...] = jnp.concatenate(
            [m_ref[...], l_ref[...], xs_ref[...], xsum_ref[...]], axis=1)


# --------------------------------------------------------------------------- #
# Wrapper helpers
# --------------------------------------------------------------------------- #
def _round_up(a, m):
    return ((a + m - 1) // m) * m


def _choose_tile_v(batch, en_units, num_topics, w_bytes,
                   budget_bytes=12 * 1024 * 1024):
    """Largest vocab tile whose double-buffered streamed footprint fits the
    per-step budget (12 MiB stays well inside v7x's 64 MiB physical VMEM;
    v5e/v6e have 128 MiB, so the same choice is safe there)."""
    for tv in (2048, 1024, 512, 256, 128):
        enc = 2 * tv * (batch * 2 + en_units * w_bytes)
        dec = 2 * tv * (batch * 2 + num_topics * w_bytes)
        if max(enc, dec) <= budget_bytes:
            return tv
    return 128


def _vmem_limit_bytes(per_step_stream_bytes):
    # double-buffered stream + resident consts/outputs + headroom; explicit so
    # v5e's 16 MiB scoped default does not cap pipelining, and capped below
    # v7x's 64 MiB physical VMEM.
    need = 2 * per_step_stream_bytes + (8 << 20)
    return int(min(max(need, 32 << 20), 48 << 20))


def _quantize_int8_cols(w):
    """Symmetric int8 quantization, one scale per column (max over axis 0)."""
    s = jnp.max(jnp.abs(w), axis=0, keepdims=True) / 127.0
    s = jnp.where(s > 0, s, 1.0)
    q = jnp.clip(jnp.round(w / s), -127.0, 127.0).astype(jnp.int8)
    return q, s.astype(jnp.float32)


# --------------------------------------------------------------------------- #
# Forward pass
# --------------------------------------------------------------------------- #
def dectm_forward(x, params, eps_noise, drop_mask_e1, drop_mask_theta,
                  *, tile_v=None, num_cores=2, weight_quant="int8"):
    """DecTM training-mode forward pass. Returns {'loss': scalar}.

    weight_quant: 'int8' (per-column scales; v5e/v6e MXU-friendly) or 'bf16'.
    num_cores:    leading 'parallel' grid axis; 2 feeds both v7x TensorCores
                  and is a harmless serial split on single-core chips.
    """
    B, V = x.shape
    E = params["w11"].shape[1]
    K = params["beta"].shape[0]
    f32 = jnp.float32

    w_bytes = 1 if weight_quant == "int8" else 2
    tv = tile_v if tile_v is not None else _choose_tile_v(B, E, K, w_bytes)
    tv = min(tv, max(128, _round_up(_round_up(V, 128) // num_cores, 128)))
    assert tv % 128 == 0, "tile_v must be a multiple of 128"

    chunk = tv * num_cores
    Vp = _round_up(V, chunk)
    tiles_per_core = (Vp // tv) // num_cores
    Kp = _round_up(K, 128)           # 128-lane-aligned mu | logvar split

    # bf16 x (streamed by both kernels), vocab axis zero-padded to the grid.
    x_p = jnp.pad(x.astype(_MXU_DTYPE), ((0, 0), (0, Vp - V)))

    # Streamed weights: pad vocab axis, then int8 (or bf16) them.
    w11 = jnp.pad(params["w11"], ((0, Vp - V), (0, 0)))
    beta = jnp.pad(params["beta"], ((0, 0), (0, Vp - V)))
    if weight_quant == "int8":
        w11_q, w11_scale = _quantize_int8_cols(w11)    # scale: (1, E)
        beta_q, _ = _quantize_int8_cols(beta)          # per-column scale cancels
    else:
        w11_q, w11_scale = w11.astype(_MXU_DTYPE), jnp.ones((1, E), f32)
        beta_q = beta.astype(_MXU_DTYPE)
    # TODO(synk): on v7x (fp8 MXU, no int8 path) stream fp8(e4m3) weights + scale.

    # Fused, 128-lane-aligned fc21|fc22 head (resident, loaded once).
    w2c = jnp.zeros((E, 2 * Kp), f32)
    w2c = w2c.at[:, :K].set(params["w21"])
    w2c = w2c.at[:, Kp:Kp + K].set(params["w22"])
    w2c = w2c.astype(_MXU_DTYPE)
    b2c = jnp.zeros((1, 2 * Kp), f32)
    b2c = b2c.at[:, :K].set(params["b21"])
    b2c = b2c.at[:, Kp:Kp + K].set(params["b22"])

    w12 = params["w12"].astype(_MXU_DTYPE)
    inv_var2 = (1.0 / params["var2"]).astype(f32)
    log_var2 = jnp.log(params["var2"]).astype(f32)

    # ---- 1) streamed x @ W11, per-core partials ----------------------------
    enc_stream = tv * (B * 2 + E * w_bytes) + B * E * 4
    partial = pl.pallas_call(
        _xw11_partial_kernel,
        out_shape=jax.ShapeDtypeStruct((num_cores, B, E), f32),
        grid_spec=pltpu.PrefetchScalarGridSpec(
            num_scalar_prefetch=0,
            grid=(num_cores, tiles_per_core),
            in_specs=[
                pl.BlockSpec((B, tv), lambda c, t: (0, c * tiles_per_core + t)),
                pl.BlockSpec((tv, E), lambda c, t: (c * tiles_per_core + t, 0)),
            ],
            out_specs=pl.BlockSpec((None, B, E), lambda c, t: (c, 0, 0)),
        ),
        compiler_params=pltpu.CompilerParams(
            dimension_semantics=("parallel", "arbitrary"),
            vmem_limit_bytes=_vmem_limit_bytes(enc_stream)),
    )(x_p, w11_q)

    acc = jnp.sum(partial, axis=0) * w11_scale     # (B, E); undo int8 scale

    # ---- 2) encoder tail (tiny, everything resident) -----------------------
    ntheta, kld = pl.pallas_call(
        functools.partial(_encoder_tail_kernel, num_topics=K, k_pad=Kp),
        out_shape=(jax.ShapeDtypeStruct((B, K), f32),
                   jax.ShapeDtypeStruct((B, 1), f32)),
    )(acc, params["b11"], w12, params["b12"], w2c, b2c,
      params["mu2"], inv_var2, log_var2,
      eps_noise, drop_mask_e1, drop_mask_theta)

    # ---- 3) streamed decode + online log-softmax, per-core partial stats ---
    nt_bf = ntheta.astype(_MXU_DTYPE)
    mean_nt = jnp.mean(ntheta, axis=0, keepdims=True).astype(_MXU_DTYPE)

    dec_stream = tv * (B * 2 + K * w_bytes)
    stats = pl.pallas_call(
        functools.partial(_decoder_kernel, v_true=V, tile_v=tv,
                          tiles_per_core=tiles_per_core),
        out_shape=jax.ShapeDtypeStruct((num_cores, B, 4), f32),
        grid_spec=pltpu.PrefetchScalarGridSpec(
            num_scalar_prefetch=0,
            grid=(num_cores, tiles_per_core),
            in_specs=[
                pl.BlockSpec((B, tv), lambda c, t: (0, c * tiles_per_core + t)),
                pl.BlockSpec((K, tv), lambda c, t: (0, c * tiles_per_core + t)),
                pl.BlockSpec((B, K), lambda c, t: (0, 0)),
                pl.BlockSpec((1, K), lambda c, t: (0, 0)),
            ],
            out_specs=pl.BlockSpec((None, B, 4), lambda c, t: (c, 0, 0)),
            scratch_shapes=[pltpu.VMEM((B, 1), f32)] * 4,  # m, l, sum(x*s), sum(x)
        ),
        compiler_params=pltpu.CompilerParams(
            dimension_semantics=("parallel", "arbitrary"),
            vmem_limit_bytes=_vmem_limit_bytes(dec_stream)),
    )(x_p, beta_q, nt_bf, mean_nt)

    # ---- cross-core logsumexp merge + loss (a handful of (B,) ops) ---------
    m_c, l_c = stats[..., 0:1], stats[..., 1:2]               # (NC, B, 1)
    m = jnp.max(m_c, axis=0)                                  # (B, 1)
    l = jnp.sum(l_c * jnp.exp(m_c - m), axis=0)               # (B, 1)
    lse = (m + jnp.log(l))[:, 0]                              # (B,)
    xs = jnp.sum(stats[..., 2], axis=0)                       # (B,)
    xsum = jnp.sum(stats[..., 3], axis=0)                     # (B,)
    recon_loss = xsum * lse - xs
    loss = jnp.mean(recon_loss + kld[:, 0])                   # true batch size
    return {"loss": loss}


def init_params(key, vocab_size, num_topics, en_units):
    """Deterministic synthetic parameter init (shapes match the PyTorch module)."""
    ks = jax.random.split(key, 9)

    def linear(kw, kb, fan_in, fan_out):
        bound = 1.0 / jnp.sqrt(jnp.float32(fan_in))
        w = jax.random.uniform(kw, (fan_in, fan_out), jnp.float32, -bound, bound)
        b = jax.random.uniform(kb, (1, fan_out), jnp.float32, -bound, bound)
        return w, b

    w11, b11 = linear(ks[0], ks[1], vocab_size, en_units)
    w12, b12 = linear(ks[2], ks[3], en_units, en_units)
    w21, b21 = linear(ks[4], ks[5], en_units, num_topics)
    w22, b22 = linear(ks[6], ks[7], en_units, num_topics)

    # beta: xavier_uniform on (num_topics, vocab_size)
    limit = jnp.sqrt(6.0 / (num_topics + vocab_size))
    beta = jax.random.uniform(
        ks[8], (num_topics, vocab_size), jnp.float32, -limit, limit)

    # prior params (a = ones): mu2 = 0, var2 = 1 - 1/K (exact closed form)
    a = jnp.ones((1, num_topics), jnp.float32)
    log_a = jnp.log(a)
    mu2 = (log_a.T - jnp.mean(log_a, axis=1)).T
    var2 = ((1.0 / a * (1.0 - 2.0 / num_topics)).T
            + 1.0 / (num_topics * num_topics) * jnp.sum(1.0 / a, axis=1)).T

    return dict(
        w11=w11, b11=b11, w12=w12, b12=b12, w21=w21, b21=b21, w22=w22, b22=b22,
        beta=beta, mu2=mu2.astype(jnp.float32), var2=var2.astype(jnp.float32),
    )


if __name__ == "__main__":
    # Smoke-test shapes only (perf tuning belongs at production shapes:
    # B >= 128, V >= 10k, tv auto-chosen at 1024-2048).
    BATCH = 8
    VOCAB = 500          # deliberately NOT a multiple of 128: exercises pad+mask
    NUM_TOPICS = 32
    EN_UNITS = 128
    DROPOUT = 0.4

    root = jax.random.PRNGKey(0)
    k_param, k_x, k_eps, k_d1, k_dt = jax.random.split(root, 5)

    params = init_params(k_param, VOCAB, NUM_TOPICS, EN_UNITS)

    # Synthetic bag-of-words input (non-negative).
    x = jax.random.uniform(k_x, (BATCH, VOCAB), jnp.float32, 0.0, 2.0)

    # Deterministic "randomness" for training-mode forward.
    eps_noise = jax.random.normal(k_eps, (BATCH, NUM_TOPICS), jnp.float32)
    keep = 1.0 - DROPOUT
    drop_mask_e1 = (
        jax.random.bernoulli(k_d1, keep, (BATCH, EN_UNITS)).astype(jnp.float32) / keep)
    drop_mask_theta = (
        jax.random.bernoulli(k_dt, keep, (BATCH, NUM_TOPICS)).astype(jnp.float32) / keep)

    # tile_v=128 so the small demo exercises the multi-tile streams, the padded
    # ragged last tile, the int8 dequant path and the two-core split grid.
    fwd = jax.jit(functools.partial(dectm_forward, tile_v=128, num_cores=2,
                                    weight_quant="int8"))
    out = fwd(x, params, eps_noise, drop_mask_e1, drop_mask_theta)
    loss = jax.block_until_ready(out["loss"])
    assert jnp.isfinite(loss), f"non-finite loss: {loss}"
    print("KERNEL_OK")
</pallas_src>

<mosaic_0001>
module attributes {stable_mosaic.version = 11 : i64} {
  func.func @_xw11_partial_kernel(%arg0: i32, %arg1: i32, %arg2: memref<8x128xbf16, #tpu.memory_space<vmem>>, %arg3: memref<128x128xi8, #tpu.memory_space<vmem>>, %arg4: memref<1x8x128xf32, #tpu.memory_space<vmem>>) attributes {dimension_semantics = [#tpu.dimension_semantics<parallel>, #tpu.dimension_semantics<arbitrary>], iteration_bounds = array<i64: 2, 2>, scalar_prefetch = 0 : i64, scratch_operands = 0 : i64, tpu.core_type = #tpu.core_type<tc>, window_params = [{transform_indices = @transform_0, window_bounds = array<i64: 8, 128>}, {transform_indices = @transform_1, window_bounds = array<i64: 128, 128>}, {transform_indices = @transform_2, window_bounds = array<i64: 1, 8, 128>}]} {
    %c0_i32 = arith.constant 0 : i32
    %0 = arith.cmpi eq, %arg1, %c0_i32 : i32
    %1 = arith.extui %0 : i1 to i32
    %c0_i32_0 = arith.constant 0 : i32
    %2 = arith.cmpi ne, %1, %c0_i32_0 : i32
    scf.if %2 {
      %cst_10 = arith.constant 0.000000e+00 : f32
      %14 = vector.broadcast %cst_10 : f32 to vector<8x128xf32>
      %c0_11 = arith.constant 0 : index
      %c0_12 = arith.constant 0 : index
      %c0_13 = arith.constant 0 : index
      %15 = vector.load %arg4[%c0_11, %c0_12, %c0_13] : memref<1x8x128xf32, #tpu.memory_space<vmem>>, vector<1x8x128xf32>
      %16 = vector.shape_cast %15 : vector<1x8x128xf32> to vector<8x128xf32>
      %17 = vector.shape_cast %14 : vector<8x128xf32> to vector<1x8x128xf32>
      tpu.vector_store %arg4[%c0_11, %c0_12, %c0_13], %17 {strides = array<i32>} : memref<1x8x128xf32, #tpu.memory_space<vmem>>, vector<1x8x128xf32>,
    } else {
    }
    %c0 = arith.constant 0 : index
    %c0_1 = arith.constant 0 : index
    %3 = vector.load %arg3[%c0, %c0_1] : memref<128x128xi8, #tpu.memory_space<vmem>>, vector<128x128xi8>
    %4 = arith.sitofp %3 : vector<128x128xi8> to vector<128x128xf32>
    %5 = arith.truncf %4 : vector<128x128xf32> to vector<128x128xbf16>
    %c0_2 = arith.constant 0 : index
    %c0_3 = arith.constant 0 : index
    %c0_4 = arith.constant 0 : index
    %6 = vector.load %arg4[%c0_2, %c0_3, %c0_4] : memref<1x8x128xf32, #tpu.memory_space<vmem>>, vector<1x8x128xf32>
    %7 = vector.shape_cast %6 : vector<1x8x128xf32> to vector<8x128xf32>
    %c0_5 = arith.constant 0 : index
    %c0_6 = arith.constant 0 : index
    %8 = vector.load %arg2[%c0_5, %c0_6] : memref<8x128xbf16, #tpu.memory_space<vmem>>, vector<8x128xbf16>
    %cst = arith.constant dense<0.000000e+00> : vector<8x128xf32>
    %9 = tpu.matmul %8, %5, %cst {dimension_numbers = #tpu.dot_dimension_numbers<[1], [0], [0], [1], [0, 0, 1, 1], [], []>} : vector<8x128xbf16>, vector<128x128xbf16>, vector<8x128xf32> -> vector<8x128xf32>
    %10 = arith.addf %7, %9 : vector<8x128xf32>
    %c0_7 = arith.constant 0 : index
    %c0_8 = arith.constant 0 : index
    %c0_9 = arith.constant 0 : index
    %11 = vector.load %arg4[%c0_7, %c0_8, %c0_9] : memref<1x8x128xf32, #tpu.memory_space<vmem>>, vector<1x8x128xf32>
    %12 = vector.shape_cast %11 : vector<1x8x128xf32> to vector<8x128xf32>
    %13 = vector.shape_cast %10 : vector<8x128xf32> to vector<1x8x128xf32>
    tpu.vector_store %arg4[%c0_7, %c0_8, %c0_9], %13 {strides = array<i32>} : memref<1x8x128xf32, #tpu.memory_space<vmem>>, vector<1x8x128xf32>,
    return
  }
  func.func @transform_0(%arg0: i32, %arg1: i32) -> (i32, i32) {
    %c2_i32 = arith.constant 2 : i32
    %0 = arith.muli %arg0, %c2_i32 : i32
    %1 = arith.addi %0, %arg1 : i32
    %c0_i32 = arith.constant 0 : i32
    %c0_i32_0 = arith.constant 0 : i32
    return %c0_i32, %1 : i32, i32
  }
  func.func @transform_1(%arg0: i32, %arg1: i32) -> (i32, i32) {
    %c2_i32 = arith.constant 2 : i32
    %0 = arith.muli %arg0, %c2_i32 : i32
    %1 = arith.addi %0, %arg1 : i32
    %c0_i32 = arith.constant 0 : i32
    %c0_i32_0 = arith.constant 0 : i32
    return %1, %c0_i32 : i32, i32
  }
  func.func @transform_2(%arg0: i32, %arg1: i32) -> (i32, i32, i32) {
    %c0_i32 = arith.constant 0 : i32
    %c0_i32_0 = arith.constant 0 : i32
    %c0_i32_1 = arith.constant 0 : i32
    return %arg0, %c0_i32, %c0_i32_0 : i32, i32, i32
  }
}

module attributes {stable_mosaic.version = 11 : i64} {
  func.func @_encoder_tail_kernel(%arg0: memref<8x128xf32, #tpu.memory_space<vmem>>, %arg1: memref<1x128xf32, #tpu.memory_space<vmem>>, %arg2: memref<128x128xbf16, #tpu.memory_space<vmem>>, %arg3: memref<1x128xf32, #tpu.memory_space<vmem>>, %arg4: memref<128x256xbf16, #tpu.memory_space<vmem>>, %arg5: memref<1x256xf32, #tpu.memory_space<vmem>>, %arg6: memref<1x32xf32, #tpu.memory_space<vmem>>, %arg7: memref<1x32xf32, #tpu.memory_space<vmem>>, %arg8: memref<1x32xf32, #tpu.memory_space<vmem>>, %arg9: memref<8x32xf32, #tpu.memory_space<vmem>>, %arg10: memref<8x128xf32, #tpu.memory_space<vmem>>, %arg11: memref<8x32xf32, #tpu.memory_space<vmem>>, %arg12: memref<8x32xf32, #tpu.memory_space<vmem>>, %arg13: memref<8x1xf32, #tpu.memory_space<vmem>>) attributes {dimension_semantics = [], scalar_prefetch = 0 : i64, scratch_operands = 0 : i64, tpu.core_type = #tpu.core_type<tc>} {
    %c0 = arith.constant 0 : index
    %c0_0 = arith.constant 0 : index
    %0 = vector.load %arg0[%c0, %c0_0] : memref<8x128xf32, #tpu.memory_space<vmem>>, vector<8x128xf32>
    %c0_1 = arith.constant 0 : index
    %c0_2 = arith.constant 0 : index
    %1 = vector.load %arg1[%c0_1, %c0_2] : memref<1x128xf32, #tpu.memory_space<vmem>>, vector<1x128xf32>
    %2 = vector.broadcast %1 : vector<1x128xf32> to vector<8x128xf32>
    %3 = arith.addf %0, %2 : vector<8x128xf32>
    %cst = arith.constant 0.000000e+00 : f32
    %4 = vector.broadcast %cst : f32 to vector<8x128xf32>
    %5 = arith.maximumf %3, %4 : vector<8x128xf32>
    %6 = math.absf %3 : vector<8x128xf32>
    %cst_3 = arith.constant 0.000000e+00 : f32
    %7 = vector.broadcast %cst_3 : f32 to vector<8x128xf32>
    %8 = arith.subf %7, %6 : vector<8x128xf32>
    %9 = math.exp %8 : vector<8x128xf32>
    %cst_4 = arith.constant 1.000000e+00 : f32
    %10 = vector.broadcast %cst_4 : f32 to vector<8x128xf32>
    %11 = arith.addf %10, %9 : vector<8x128xf32>
    %12 = math.log %11 : vector<8x128xf32>
    %13 = arith.addf %5, %12 : vector<8x128xf32>
    %14 = arith.truncf %13 : vector<8x128xf32> to vector<8x128xbf16>
    %c0_5 = arith.constant 0 : index
    %c0_6 = arith.constant 0 : index
    %15 = vector.load %arg2[%c0_5, %c0_6] : memref<128x128xbf16, #tpu.memory_space<vmem>>, vector<128x128xbf16>
    %cst_7 = arith.constant dense<0.000000e+00> : vector<8x128xf32>
    %16 = tpu.matmul %14, %15, %cst_7 {dimension_numbers = #tpu.dot_dimension_numbers<[1], [0], [0], [1], [0, 0, 1, 1], [], []>} : vector<8x128xbf16>, vector<128x128xbf16>, vector<8x128xf32> -> vector<8x128xf32>
    %c0_8 = arith.constant 0 : index
    %c0_9 = arith.constant 0 : index
    %17 = vector.load %arg3[%c0_8, %c0_9] : memref<1x128xf32, #tpu.memory_space<vmem>>, vector<1x128xf32>
    %18 = vector.broadcast %17 : vector<1x128xf32> to vector<8x128xf32>
    %19 = arith.addf %16, %18 : vector<8x128xf32>
    %cst_10 = arith.constant 0.000000e+00 : f32
    %20 = vector.broadcast %cst_10 : f32 to vector<8x128xf32>
    %21 = arith.maximumf %19, %20 : vector<8x128xf32>
    %22 = math.absf %19 : vector<8x128xf32>
    %cst_11 = arith.constant 0.000000e+00 : f32
    %23 = vector.broadcast %cst_11 : f32 to vector<8x128xf32>
    %24 = arith.subf %23, %22 : vector<8x128xf32>
    %25 = math.exp %24 : vector<8x128xf32>
    %cst_12 = arith.constant 1.000000e+00 : f32
    %26 = vector.broadcast %cst_12 : f32 to vector<8x128xf32>
    %27 = arith.addf %26, %25 : vector<8x128xf32>
    %28 = math.log %27 : vector<8x128xf32>
    %29 = arith.addf %21, %28 : vector<8x128xf32>
    %c0_13 = arith.constant 0 : index
    %c0_14 = arith.constant 0 : index
    %30 = vector.load %arg10[%c0_13, %c0_14] : memref<8x128xf32, #tpu.memory_space<vmem>>, vector<8x128xf32>
    %31 = arith.mulf %29, %30 : vector<8x128xf32>
    %32 = arith.truncf %31 : vector<8x128xf32> to vector<8x128xbf16>
    %c0_15 = arith.constant 0 : index
    %c0_16 = arith.constant 0 : index
    %33 = vector.load %arg4[%c0_15, %c0_16] : memref<128x256xbf16, #tpu.memory_space<vmem>>, vector<128x256xbf16>
    %cst_17 = arith.constant dense<0.000000e+00> : vector<8x256xf32>
    %34 = tpu.matmul %32, %33, %cst_17 {dimension_numbers = #tpu.dot_dimension_numbers<[1], [0], [0], [1], [0, 0, 1, 1], [], []>} : vector<8x128xbf16>, vector<128x256xbf16>, vector<8x256xf32> -> vector<8x256xf32>
    %c0_18 = arith.constant 0 : index
    %c0_19 = arith.constant 0 : index
    %35 = vector.load %arg5[%c0_18, %c0_19] : memref<1x256xf32, #tpu.memory_space<vmem>>, vector<1x256xf32>
    %36 = vector.broadcast %35 : vector<1x256xf32> to vector<8x256xf32>
    %37 = arith.addf %34, %36 : vector<8x256xf32>
    %cst_20 = arith.constant dense<0.000000e+00> : vector<256xf32>
    %38 = vector.multi_reduction <add>, %37, %cst_20 [0] : vector<8x256xf32> to vector<256xf32>
    %39 = vector.shape_cast %38 : vector<256xf32> to vector<1x256xf32>
    %cst_21 = arith.constant 8.000000e+00 : f32
    %40 = vector.broadcast %cst_21 : f32 to vector<1x256xf32>
    %41 = arith.divf %39, %40 : vector<1x256xf32>
    %42 = vector.broadcast %41 : vector<1x256xf32> to vector<8x256xf32>
    %43 = arith.subf %37, %42 : vector<8x256xf32>
    %44 = vector.broadcast %41 : vector<1x256xf32> to vector<8x256xf32>
    %45 = arith.subf %37, %44 : vector<8x256xf32>
    %46 = arith.mulf %43, %45 : vector<8x256xf32>
    %cst_22 = arith.constant dense<0.000000e+00> : vector<256xf32>
    %47 = vector.multi_reduction <add>, %46, %cst_22 [0] : vector<8x256xf32> to vector<256xf32>
    %48 = vector.shape_cast %47 : vector<256xf32> to vector<1x256xf32>
    %cst_23 = arith.constant 8.000000e+00 : f32
    %49 = vector.broadcast %cst_23 : f32 to vector<1x256xf32>
    %50 = arith.divf %48, %49 : vector<1x256xf32>
    %51 = vector.broadcast %41 : vector<1x256xf32> to vector<8x256xf32>
    %52 = arith.subf %37, %51 : vector<8x256xf32>
    %cst_24 = arith.constant 1.000000e-03 : f32
    %53 = vector.broadcast %cst_24 : f32 to vector<1x256xf32>
    %54 = arith.addf %50, %53 : vector<1x256xf32>
    %55 = math.rsqrt %54 : vector<1x256xf32>
    %56 = vector.broadcast %55 : vector<1x256xf32> to vector<8x256xf32>
    %57 = arith.mulf %52, %56 : vector<8x256xf32>
    %58 = vector.extract_strided_slice %57 {offsets = [0, 0], sizes = [8, 32], strides = [1, 1]} : vector<8x256xf32> to vector<8x32xf32>
    %59 = vector.extract_strided_slice %57 {offsets = [0, 128], sizes = [8, 32], strides = [1, 1]} : vector<8x256xf32> to vector<8x32xf32>
    %c0_25 = arith.constant 0 : index
    %c0_26 = arith.constant 0 : index
    %60 = vector.load %arg9[%c0_25, %c0_26] : memref<8x32xf32, #tpu.memory_space<vmem>>, vector<8x32xf32>
    %cst_27 = arith.constant 5.000000e-01 : f32
    %61 = vector.broadcast %cst_27 : f32 to vector<8x32xf32>
    %62 = arith.mulf %61, %59 : vector<8x32xf32>
    %63 = math.exp %62 : vector<8x32xf32>
    %64 = arith.mulf %60, %63 : vector<8x32xf32>
    %65 = arith.addf %58, %64 : vector<8x32xf32>
    %cst_28 = arith.constant dense<0xFF800000> : vector<8xf32>
    %66 = vector.multi_reduction <maximumf>, %65, %cst_28 [1] : vector<8x32xf32> to vector<8xf32>
    %67 = vector.shape_cast %66 : vector<8xf32> to vector<8x1xf32>
    %68 = vector.broadcast %67 : vector<8x1xf32> to vector<8x32xf32>
    %69 = arith.subf %65, %68 : vector<8x32xf32>
    %70 = math.exp %69 : vector<8x32xf32>
    %cst_29 = arith.constant dense<0.000000e+00> : vector<8xf32>
    %71 = vector.multi_reduction <add>, %70, %cst_29 [1] : vector<8x32xf32> to vector<8xf32>
    %72 = vector.shape_cast %71 : vector<8xf32> to vector<8x1xf32>
    %73 = tpu.reciprocal %72 {approx = true} : vector<8x1xf32> -> vector<8x1xf32>
    %74 = vector.broadcast %73 : vector<8x1xf32> to vector<8x32xf32>
    %75 = arith.mulf %70, %74 : vector<8x32xf32>
    %c0_30 = arith.constant 0 : index
    %c0_31 = arith.constant 0 : index
    %76 = vector.load %arg11[%c0_30, %c0_31] : memref<8x32xf32, #tpu.memory_space<vmem>>, vector<8x32xf32>
    %77 = arith.mulf %75, %76 : vector<8x32xf32>
    %78 = arith.mulf %77, %77 : vector<8x32xf32>
    %cst_32 = arith.constant dense<0.000000e+00> : vector<8xf32>
    %79 = vector.multi_reduction <add>, %78, %cst_32 [1] : vector<8x32xf32> to vector<8xf32>
    %80 = vector.shape_cast %79 : vector<8xf32> to vector<8x1xf32>
    %cst_33 = arith.constant 1.000000e-24 : f32
    %81 = vector.broadcast %cst_33 : f32 to vector<8x1xf32>
    %82 = arith.maximumf %80, %81 : vector<8x1xf32>
    %83 = math.rsqrt %82 : vector<8x1xf32>
    %84 = vector.broadcast %83 : vector<8x1xf32> to vector<8x32xf32>
    %85 = arith.mulf %77, %84 : vector<8x32xf32>
    %c0_34 = arith.constant 0 : index
    %c0_35 = arith.constant 0 : index
    %86 = vector.load %arg12[%c0_34, %c0_35] : memref<8x32xf32, #tpu.memory_space<vmem>>, vector<8x32xf32>
    tpu.vector_store %arg12[%c0_34, %c0_35], %85 {strides = array<i32>} : memref<8x32xf32, #tpu.memory_space<vmem>>, vector<8x32xf32>,
    %87 = math.exp %59 : vector<8x32xf32>
    %c0_36 = arith.constant 0 : index
    %c0_37 = arith.constant 0 : index
    %88 = vector.load %arg6[%c0_36, %c0_37] : memref<1x32xf32, #tpu.memory_space<vmem>>, vector<1x32xf32>
    %89 = vector.broadcast %88 : vector<1x32xf32> to vector<8x32xf32>
    %90 = arith.subf %58, %89 : vector<8x32xf32>
    %c0_38 = arith.constant 0 : index
    %c0_39 = arith.constant 0 : index
    %91 = vector.load %arg7[%c0_38, %c0_39] : memref<1x32xf32, #tpu.memory_space<vmem>>, vector<1x32xf32>
    %92 = vector.broadcast %91 : vector<1x32xf32> to vector<8x32xf32>
    %93 = arith.mulf %87, %92 : vector<8x32xf32>
    %94 = arith.mulf %90, %90 : vector<8x32xf32>
    %95 = vector.broadcast %91 : vector<1x32xf32> to vector<8x32xf32>
    %96 = arith.mulf %94, %95 : vector<8x32xf32>
    %97 = arith.addf %93, %96 : vector<8x32xf32>
    %c0_40 = arith.constant 0 : index
    %c0_41 = arith.constant 0 : index
    %98 = vector.load %arg8[%c0_40, %c0_41] : memref<1x32xf32, #tpu.memory_space<vmem>>, vector<1x32xf32>
    %99 = vector.broadcast %98 : vector<1x32xf32> to vector<8x32xf32>
    %100 = arith.addf %97, %99 : vector<8x32xf32>
    %101 = arith.subf %100, %59 : vector<8x32xf32>
    %cst_42 = arith.constant dense<0.000000e+00> : vector<8xf32>
    %102 = vector.multi_reduction <add>, %101, %cst_42 [1] : vector<8x32xf32> to vector<8xf32>
    %103 = vector.shape_cast %102 : vector<8xf32> to vector<8x1xf32>
    %cst_43 = arith.constant 3.200000e+01 : f32
    %104 = vector.broadcast %cst_43 : f32 to vector<8x1xf32>
    %105 = arith.subf %103, %104 : vector<8x1xf32>
    %cst_44 = arith.constant 5.000000e-01 : f32
    %106 = vector.broadcast %cst_44 : f32 to vector<8x1xf32>
    %107 = arith.mulf %106, %105 : vector<8x1xf32>
    %c0_45 = arith.constant 0 : index
    %c0_46 = arith.constant 0 : index
    %108 = vector.load %arg13[%c0_45, %c0_46] : memref<8x1xf32, #tpu.memory_space<vmem>>, vector<8x1xf32>
    tpu.vector_store %arg13[%c0_45, %c0_46], %107 {strides = array<i32>} : memref<8x1xf32, #tpu.memory_space<vmem>>, vector<8x1xf32>,
    return
  }
}

module attributes {stable_mosaic.version = 11 : i64} {
  func.func @_decoder_kernel(%arg0: i32, %arg1: i32, %arg2: memref<8x128xbf16, #tpu.memory_space<vmem>>, %arg3: memref<32x128xi8, #tpu.memory_space<vmem>>, %arg4: memref<8x32xbf16, #tpu.memory_space<vmem>>, %arg5: memref<1x32xbf16, #tpu.memory_space<vmem>>, %arg6: memref<1x8x4xf32, #tpu.memory_space<vmem>>, %arg7: memref<8x1xf32, #tpu.memory_space<vmem>>, %arg8: memref<8x1xf32, #tpu.memory_space<vmem>>, %arg9: memref<8x1xf32, #tpu.memory_space<vmem>>, %arg10: memref<8x1xf32, #tpu.memory_space<vmem>>) attributes {dimension_semantics = [#tpu.dimension_semantics<parallel>, #tpu.dimension_semantics<arbitrary>], iteration_bounds = array<i64: 2, 2>, scalar_prefetch = 0 : i64, scratch_operands = 4 : i64, tpu.core_type = #tpu.core_type<tc>, window_params = [{transform_indices = @transform_0, window_bounds = array<i64: 8, 128>}, {transform_indices = @transform_1, window_bounds = array<i64: 32, 128>}, {pipeline_mode = #tpu.pipeline_mode<synchronous>, transform_indices = @transform_2, window_bounds = array<i64: 8, 32>}, {pipeline_mode = #tpu.pipeline_mode<synchronous>, transform_indices = @transform_3, window_bounds = array<i64: 1, 32>}, {transform_indices = @transform_4, window_bounds = array<i64: 1, 8, 4>}]} {
    %c0_i32 = arith.constant 0 : i32
    %0 = arith.cmpi eq, %arg1, %c0_i32 : i32
    %1 = arith.extui %0 : i1 to i32
    %c0_i32_0 = arith.constant 0 : i32
    %2 = arith.cmpi ne, %1, %c0_i32_0 : i32
    scf.if %2 {
      %cst_39 = arith.constant -1.000000e+30 : f32
      %80 = vector.broadcast %cst_39 : f32 to vector<8x1xf32>
      %c0_40 = arith.constant 0 : index
      %c0_41 = arith.constant 0 : index
      %81 = vector.load %arg7[%c0_40, %c0_41] : memref<8x1xf32, #tpu.memory_space<vmem>>, vector<8x1xf32>
      tpu.vector_store %arg7[%c0_40, %c0_41], %80 {strides = array<i32>} : memref<8x1xf32, #tpu.memory_space<vmem>>, vector<8x1xf32>,
      %cst_42 = arith.constant 0.000000e+00 : f32
      %82 = vector.broadcast %cst_42 : f32 to vector<8x1xf32>
      %c0_43 = arith.constant 0 : index
      %c0_44 = arith.constant 0 : index
      %83 = vector.load %arg8[%c0_43, %c0_44] : memref<8x1xf32, #tpu.memory_space<vmem>>, vector<8x1xf32>
      tpu.vector_store %arg8[%c0_43, %c0_44], %82 {strides = array<i32>} : memref<8x1xf32, #tpu.memory_space<vmem>>, vector<8x1xf32>,
      %cst_45 = arith.constant 0.000000e+00 : f32
      %84 = vector.broadcast %cst_45 : f32 to vector<8x1xf32>
      %c0_46 = arith.constant 0 : index
      %c0_47 = arith.constant 0 : index
      %85 = vector.load %arg9[%c0_46, %c0_47] : memref<8x1xf32, #tpu.memory_space<vmem>>, vector<8x1xf32>
      tpu.vector_store %arg9[%c0_46, %c0_47], %84 {strides = array<i32>} : memref<8x1xf32, #tpu.memory_space<vmem>>, vector<8x1xf32>,
      %cst_48 = arith.constant 0.000000e+00 : f32
      %86 = vector.broadcast %cst_48 : f32 to vector<8x1xf32>
      %c0_49 = arith.constant 0 : index
      %c0_50 = arith.constant 0 : index
      %87 = vector.load %arg10[%c0_49, %c0_50] : memref<8x1xf32, #tpu.memory_space<vmem>>, vector<8x1xf32>
      tpu.vector_store %arg10[%c0_49, %c0_50], %86 {strides = array<i32>} : memref<8x1xf32, #tpu.memory_space<vmem>>, vector<8x1xf32>,
    } else {
    }
    %c0 = arith.constant 0 : index
    %c0_1 = arith.constant 0 : index
    %3 = vector.load %arg3[%c0, %c0_1] : memref<32x128xi8, #tpu.memory_space<vmem>>, vector<32x128xi8>
    %4 = arith.sitofp %3 : vector<32x128xi8> to vector<32x128xf32>
    %5 = arith.mulf %4, %4 : vector<32x128xf32>
    %cst = arith.constant dense<0.000000e+00> : vector<128xf32>
    %6 = vector.multi_reduction <add>, %5, %cst [0] : vector<32x128xf32> to vector<128xf32>
    %7 = vector.shape_cast %6 : vector<128xf32> to vector<1x128xf32>
    %cst_2 = arith.constant 1.000000e-24 : f32
    %8 = vector.broadcast %cst_2 : f32 to vector<1x128xf32>
    %9 = arith.maximumf %7, %8 : vector<1x128xf32>
    %10 = math.rsqrt %9 : vector<1x128xf32>
    %11 = vector.broadcast %10 : vector<1x128xf32> to vector<32x128xf32>
    %12 = arith.mulf %4, %11 : vector<32x128xf32>
    %13 = arith.truncf %12 : vector<32x128xf32> to vector<32x128xbf16>
    %c0_3 = arith.constant 0 : index
    %c0_4 = arith.constant 0 : index
    %14 = vector.load %arg4[%c0_3, %c0_4] : memref<8x32xbf16, #tpu.memory_space<vmem>>, vector<8x32xbf16>
    %cst_5 = arith.constant dense<0.000000e+00> : vector<8x128xf32>
    %15 = tpu.matmul %14, %13, %cst_5 {dimension_numbers = #tpu.dot_dimension_numbers<[1], [0], [0], [1], [0, 0, 1, 1], [], []>} : vector<8x32xbf16>, vector<32x128xbf16>, vector<8x128xf32> -> vector<8x128xf32>
    %c0_6 = arith.constant 0 : index
    %c0_7 = arith.constant 0 : index
    %16 = vector.load %arg5[%c0_6, %c0_7] : memref<1x32xbf16, #tpu.memory_space<vmem>>, vector<1x32xbf16>
    %cst_8 = arith.constant dense<0.000000e+00> : vector<1x128xf32>
    %17 = tpu.matmul %16, %13, %cst_8 {dimension_numbers = #tpu.dot_dimension_numbers<[1], [0], [0], [1], [0, 0, 1, 1], [], []>} : vector<1x32xbf16>, vector<32x128xbf16>, vector<1x128xf32> -> vector<1x128xf32>
    %18 = arith.mulf %15, %15 : vector<8x128xf32>
    %cst_9 = arith.constant dense<0.000000e+00> : vector<128xf32>
    %19 = vector.multi_reduction <add>, %18, %cst_9 [0] : vector<8x128xf32> to vector<128xf32>
    %20 = vector.shape_cast %19 : vector<128xf32> to vector<1x128xf32>
    %cst_10 = arith.constant 8.000000e+00 : f32
    %21 = vector.broadcast %cst_10 : f32 to vector<1x128xf32>
    %22 = arith.divf %20, %21 : vector<1x128xf32>
    %23 = arith.mulf %17, %17 : vector<1x128xf32>
    %24 = arith.subf %22, %23 : vector<1x128xf32>
    %cst_11 = arith.constant 0.000000e+00 : f32
    %25 = vector.broadcast %cst_11 : f32 to vector<1x128xf32>
    %26 = arith.maximumf %24, %25 : vector<1x128xf32>
    %27 = vector.broadcast %17 : vector<1x128xf32> to vector<8x128xf32>
    %28 = arith.subf %15, %27 : vector<8x128xf32>
    %cst_12 = arith.constant 1.000000e-03 : f32
    %29 = vector.broadcast %cst_12 : f32 to vector<1x128xf32>
    %30 = arith.addf %26, %29 : vector<1x128xf32>
    %31 = math.rsqrt %30 : vector<1x128xf32>
    %32 = vector.broadcast %31 : vector<1x128xf32> to vector<8x128xf32>
    %33 = arith.mulf %28, %32 : vector<8x128xf32>
    %c2_i32 = arith.constant 2 : i32
    %34 = arith.muli %arg0, %c2_i32 : i32
    %35 = arith.addi %34, %arg1 : i32
    %c128_i32 = arith.constant 128 : i32
    %36 = arith.muli %35, %c128_i32 : i32
    %37 = tpu.iota {dimensions = array<i32: 1>} : vector<1x128xi32>
    %38 = vector.broadcast %36 : i32 to vector<1x128xi32>
    %39 = arith.addi %38, %37 : vector<1x128xi32>
    %c500_i32 = arith.constant 500 : i32
    %40 = vector.broadcast %c500_i32 : i32 to vector<1x128xi32>
    %41 = arith.cmpi slt, %39, %40 : vector<1x128xi32>
    %cst_13 = arith.constant -1.000000e+30 : f32
    %42 = vector.shape_cast %41 : vector<1x128xi1> to vector<1x128xi1>
    %43 = vector.broadcast %42 : vector<1x128xi1> to vector<8x128xi1>
    %44 = vector.broadcast %cst_13 : f32 to vector<8x128xf32>
    %45 = arith.select %43, %33, %44 : vector<8x128xi1>, vector<8x128xf32>
    %c0_14 = arith.constant 0 : index
    %c0_15 = arith.constant 0 : index
    %46 = vector.load %arg7[%c0_14, %c0_15] : memref<8x1xf32, #tpu.memory_space<vmem>>, vector<8x1xf32>
    %cst_16 = arith.constant dense<0xFF800000> : vector<8xf32>
    %47 = vector.multi_reduction <maximumf>, %45, %cst_16 [1] : vector<8x128xf32> to vector<8xf32>
    %48 = vector.shape_cast %47 : vector<8xf32> to vector<8x1xf32>
    %49 = arith.maximumf %46, %48 : vector<8x1xf32>
    %c0_17 = arith.constant 0 : index
    %c0_18 = arith.constant 0 : index
    %50 = vector.load %arg7[%c0_17, %c0_18] : memref<8x1xf32, #tpu.memory_space<vmem>>, vector<8x1xf32>
    %51 = arith.subf %50, %49 : vector<8x1xf32>
    %52 = math.exp %51 : vector<8x1xf32>
    %c0_19 = arith.constant 0 : index
    %c0_20 = arith.constant 0 : index
    %53 = vector.load %arg8[%c0_19, %c0_20] : memref<8x1xf32, #tpu.memory_space<vmem>>, vector<8x1xf32>
    %54 = arith.mulf %53, %52 : vector<8x1xf32>
    %55 = vector.broadcast %49 : vector<8x1xf32> to vector<8x128xf32>
    %56 = arith.subf %45, %55 : vector<8x128xf32>
    %57 = math.exp %56 : vector<8x128xf32>
    %cst_21 = arith.constant dense<0.000000e+00> : vector<8xf32>
    %58 = vector.multi_reduction <add>, %57, %cst_21 [1] : vector<8x128xf32> to vector<8xf32>
    %59 = vector.shape_cast %58 : vector<8xf32> to vector<8x1xf32>
    %60 = arith.addf %54, %59 : vector<8x1xf32>
    %c0_22 = arith.constant 0 : index
    %c0_23 = arith.constant 0 : index
    %61 = vector.load %arg8[%c0_22, %c0_23] : memref<8x1xf32, #tpu.memory_space<vmem>>, vector<8x1xf32>
    tpu.vector_store %arg8[%c0_22, %c0_23], %60 {strides = array<i32>} : memref<8x1xf32, #tpu.memory_space<vmem>>, vector<8x1xf32>,
    %c0_24 = arith.constant 0 : index
    %c0_25 = arith.constant 0 : index
    %62 = vector.load %arg7[%c0_24, %c0_25] : memref<8x1xf32, #tpu.memory_space<vmem>>, vector<8x1xf32>
    tpu.vector_store %arg7[%c0_24, %c0_25], %49 {strides = array<i32>} : memref<8x1xf32, #tpu.memory_space<vmem>>, vector<8x1xf32>,
    %c0_26 = arith.constant 0 : index
    %c0_27 = arith.constant 0 : index
    %63 = vector.load %arg2[%c0_26, %c0_27] : memref<8x128xbf16, #tpu.memory_space<vmem>>, vector<8x128xbf16>
    %c0_28 = arith.constant 0 : index
    %c0_29 = arith.constant 0 : index
    %64 = vector.load %arg9[%c0_28, %c0_29] : memref<8x1xf32, #tpu.memory_space<vmem>>, vector<8x1xf32>
    %65 = arith.extf %63 : vector<8x128xbf16> to vector<8x128xf32>
    %66 = arith.mulf %65, %33 : vector<8x128xf32>
    %cst_30 = arith.constant dense<0.000000e+00> : vector<8xf32>
    %67 = vector.multi_reduction <add>, %66, %cst_30 [1] : vector<8x128xf32> to vector<8xf32>
    %68 = vector.shape_cast %67 : vector<8xf32> to vector<8x1xf32>
    %69 = arith.addf %64, %68 : vector<8x1xf32>
    %c0_31 = arith.constant 0 : index
    %c0_32 = arith.constant 0 : index
    %70 = vector.load %arg9[%c0_31, %c0_32] : memref<8x1xf32, #tpu.memory_space<vmem>>, vector<8x1xf32>
    tpu.vector_store %arg9[%c0_31, %c0_32], %69 {strides = array<i32>} : memref<8x1xf32, #tpu.memory_space<vmem>>, vector<8x1xf32>,
    %c0_33 = arith.constant 0 : index
    %c0_34 = arith.constant 0 : index
    %71 = vector.load %arg10[%c0_33, %c0_34] : memref<8x1xf32, #tpu.memory_space<vmem>>, vector<8x1xf32>
    %72 = arith.extf %63 : vector<8x128xbf16> to vector<8x128xf32>
    %cst_35 = arith.constant dense<0.000000e+00> : vector<8xf32>
    %73 = vector.multi_reduction <add>, %72, %cst_35 [1] : vector<8x128xf32> to vector<8xf32>
    %74 = vector.shape_cast %73 : vector<8xf32> to vector<8x1xf32>
    %75 = arith.addf %71, %74 : vector<8x1xf32>
    %c0_36 = arith.constant 0 : index
    %c0_37 = arith.constant 0 : index
    %76 = vector.load %arg10[%c0_36, %c0_37] : memref<8x1xf32, #tpu.memory_space<vmem>>, vector<8x1xf32>
    tpu.vector_store %arg10[%c0_36, %c0_37], %75 {strides = array<i32>} : memref<8x1xf32, #tpu.memory_space<vmem>>, vector<8x1xf32>,
    %c1_i32 = arith.constant 1 : i32
    %77 = arith.cmpi eq, %arg1, %c1_i32 : i32
    %78 = arith.extui %77 : i1 to i32
    %c0_i32_38 = arith.constant 0 : i32
    %79 = arith.cmpi ne, %78, %c0_i32_38 : i32
    scf.if %79 {
      %c0_39 = arith.constant 0 : index
      %c0_40 = arith.constant 0 : index
      %80 = vector.load %arg7[%c0_39, %c0_40] : memref<8x1xf32, #tpu.memory_space<vmem>>, vector<8x1xf32>
      %c0_41 = arith.constant 0 : index
      %c0_42 = arith.constant 0 : index
      %81 = vector.load %arg8[%c0_41, %c0_42] : memref<8x1xf32, #tpu.memory_space<vmem>>, vector<8x1xf32>
      %c0_43 = arith.constant 0 : index
      %c0_44 = arith.constant 0 : index
      %82 = vector.load %arg9[%c0_43, %c0_44] : memref<8x1xf32, #tpu.memory_space<vmem>>, vector<8x1xf32>
      %c0_45 = arith.constant 0 : index
      %c0_46 = arith.constant 0 : index
      %83 = vector.load %arg10[%c0_45, %c0_46] : memref<8x1xf32, #tpu.memory_space<vmem>>, vector<8x1xf32>
      %84 = tpu.concatenate %80, %81, %82, %83 in 1 : vector<8x1xf32>, vector<8x1xf32>, vector<8x1xf32>, vector<8x1xf32> -> vector<8x4xf32>
      %c0_47 = arith.constant 0 : index
      %c0_48 = arith.constant 0 : index
      %c0_49 = arith.constant 0 : index
      %85 = vector.load %arg6[%c0_47, %c0_48, %c0_49] : memref<1x8x4xf32, #tpu.memory_space<vmem>>, vector<1x8x4xf32>
      %86 = vector.shape_cast %85 : vector<1x8x4xf32> to vector<8x4xf32>
      %87 = vector.shape_cast %84 : vector<8x4xf32> to vector<1x8x4xf32>
      tpu.vector_store %arg6[%c0_47, %c0_48, %c0_49], %87 {strides = array<i32>} : memref<1x8x4xf32, #tpu.memory_space<vmem>>, vector<1x8x4xf32>,
    } else {
    }
    return
  }
  func.func @transform_0(%arg0: i32, %arg1: i32) -> (i32, i32) {
    %c2_i32 = arith.constant 2 : i32
    %0 = arith.muli %arg0, %c2_i32 : i32
    %1 = arith.addi %0, %arg1 : i32
    %c0_i32 = arith.constant 0 : i32
    %c0_i32_0 = arith.constant 0 : i32
    return %c0_i32, %1 : i32, i32
  }
  func.func @transform_1(%arg0: i32, %arg1: i32) -> (i32, i32) {
    %c2_i32 = arith.constant 2 : i32
    %0 = arith.muli %arg0, %c2_i32 : i32
    %1 = arith.addi %0, %arg1 : i32
    %c0_i32 = arith.constant 0 : i32
    %c0_i32_0 = arith.constant 0 : i32
    return %c0_i32, %1 : i32, i32
  }
  func.func @transform_2(%arg0: i32, %arg1: i32) -> (i32, i32) {
    %c0_i32 = arith.constant 0 : i32
    %c0_i32_0 = arith.constant 0 : i32
    %c0_i32_1 = arith.constant 0 : i32
    return %c0_i32, %c0_i32_0 : i32, i32
  }
  func.func @transform_3(%arg0: i32, %arg1: i32) -> (i32, i32) {
    %c0_i32 = arith.constant 0 : i32
    %c0_i32_0 = arith.constant 0 : i32
    %c0_i32_1 = arith.constant 0 : i32
    return %c0_i32, %c0_i32_0 : i32, i32
  }
  func.func @transform_4(%arg0: i32, %arg1: i32) -> (i32, i32, i32) {
    %c0_i32 = arith.constant 0 : i32
    %c0_i32_0 = arith.constant 0 : i32
    %c0_i32_1 = arith.constant 0 : i32
    return %arg0, %c0_i32, %c0_i32_0 : i32, i32, i32
  }
}

</mosaic_0001>

<llo_original>
// kernel: dectm_forward.3
$region0: #{dectm_forward.3}
  #allocation0 [shape = 'u32[]', space=smem, size = 0x4, offset = 0x4, fixed_abs, tag = 'smem constant byte address 0x4 - core index']
  #allocation1 [shape = 'u32[144,128]{1,0:T(1,128)}', space=vmem, size = 0x12000, scoped, tag = 'internal scratch']
  %s0 = inlined_call_operand.vmem [shape: bf16[8,512], index: 0, kind: input, shape index: {}]
  %s1 = inlined_call_operand.vmem [shape: s8[512,128], index: 1, kind: input, shape index: {}]
  %s2 = inlined_call_operand.vmem [shape: f32[2,8,128], index: 2, kind: output, shape index: {}]
  %s3 = sld [smem:[#allocation0]]
  $region45: #{dectm_forward.3} parent=0
    _
  %s5 = ssub.s32 1, %s3
  %s6 = scalar_select 0, %s5, %s3
  loop: start=0, step=1, limit=6
  $region2: #{dectm_forward.3} parent=0 // loop_pre_header
    _
  $region3: #{dectm_forward.3} parent=0 // loop_header
    %s8 = sphi 0, %s12
    %p9 = scmp.ge.s32.totalorder %s8, 6
    %s15 = sphi 0, %s27
    %s16 = sphi 0, %s23
    %s17 = sphi 0, %s15
    %s18 = sphi 0, %s16
    %s19 = sphi 0, %s17
    %s20 = sphi 0, %s18
    %s34 = sphi 0, %s36
    %s37 = sphi 0, %s34
    %s38 = sphi 0, %s37
    %s54 = sphi 0, %s38
    %s64 = sphi 0, %s66
    %s67 = sphi 0, %s64
    %s68 = sphi 0, %s67
    %s84 = sphi 0, %s68
    %s90 = sphi 0, %s92
    %s93 = sphi 0, %s90
    %s94 = sphi 0, %s93
    %s110 = sphi 0, %s94
  $region4: #{dectm_forward.3} parent=0 // loop_header_branch
    %11 = sbr.rel (%p9) target = $region8
  $region5: #{dectm_forward.3} parent=0 // loop_body
    %s13 = ssub.s32 %s8, 1
    %s14 = ssub.s32 %s8, 2
    %s21 = sadd.s32 1, %s16
    %p22 = scmp.ge.s32.totalorder %s21, 2
    %s23 = scalar_select %p22, 0, %s21
    %s24 = sadd.s32 1, %s15
    %s25 = scalar_select %p22, %s24, %s15
    %p26 = scmp.ge.s32.totalorder %s25, 2
    %s27 = scalar_select %p26, 0, %s25
    %s28 = smul.u32 %s15, 2
    %s29 = sadd.s32 %s28, %s16
    %s30 = smul.u32 %s27, 2
    %s31 = sadd.s32 %s30, %s23
    %s32 = ssub.s32 %s29, %s31
    %p33 = scmp.eq.s32.totalorder %s32, 0
    %s35 = sadd.s32 %s34, 1
    %s36 = scalar_select %p33, %s34, %s35
    %p39 = pneg %p33
    %p40 = scmp.eq.s32.totalorder %s8, 3
    %p41 = por %p39, %p40
    %p42 = scmp.ne.s32.totalorder %s34, %s37
    %p43 = scmp.eq.s32.totalorder %s8, 0
    %p44 = por %p42, %p43
    %p45 = scmp.ne.s32.totalorder %s34, %s37
    %p46 = scmp.eq.s32.totalorder %s13, 3
    %p47 = por %p45, %p46
    %p48 = scmp.ne.s32.totalorder %s37, %s38
    %p49 = scmp.eq.s32.totalorder %s13, 0
    %p50 = por %p48, %p49
    %p51 = scmp.ne.s32.totalorder %s37, %s38
    %p52 = scmp.eq.s32.totalorder %s14, 3
    %p53 = por %p51, %p52
    %p55 = scmp.ne.s32.totalorder %s38, %s54
    %p56 = scmp.eq.s32.totalorder %s14, 0
    %p57 = por %p55, %p56
    %s58 = smul.u32 %s15, 2
    %s59 = sadd.s32 %s58, %s16
    %s60 = smul.u32 %s27, 2
    %s61 = sadd.s32 %s60, %s23
    %s62 = ssub.s32 %s59, %s61
    %p63 = scmp.eq.s32.totalorder %s62, 0
    %s65 = sadd.s32 %s64, 1
    %s66 = scalar_select %p63, %s64, %s65
    %p69 = pneg %p63
    %p70 = scmp.eq.s32.totalorder %s8, 3
    %p71 = por %p69, %p70
    %p72 = scmp.ne.s32.totalorder %s64, %s67
    %p73 = scmp.eq.s32.totalorder %s8, 0
    %p74 = por %p72, %p73
    %p75 = scmp.ne.s32.totalorder %s64, %s67
    %p76 = scmp.eq.s32.totalorder %s13, 3
    %p77 = por %p75, %p76
    %p78 = scmp.ne.s32.totalorder %s67, %s68
    %p79 = scmp.eq.s32.totalorder %s13, 0
    %p80 = por %p78, %p79
    %p81 = scmp.ne.s32.totalorder %s67, %s68
    %p82 = scmp.eq.s32.totalorder %s14, 3
    %p83 = por %p81, %p82
    %p85 = scmp.ne.s32.totalorder %s68, %s84
    %p86 = scmp.eq.s32.totalorder %s14, 0
    %p87 = por %p85, %p86
    %s88 = ssub.s32 %s15, %s27
    %p89 = scmp.eq.s32.totalorder %s88, 0
    %s91 = sadd.s32 %s90, 1
    %s92 = scalar_select %p89, %s90, %s91
    %p95 = pneg %p89
    %p96 = scmp.eq.s32.totalorder %s8, 3
    %p97 = por %p95, %p96
    %p98 = scmp.ne.s32.totalorder %s90, %s93
    %p99 = scmp.eq.s32.totalorder %s8, 0
    %p100 = por %p98, %p99
    %p101 = scmp.ne.s32.totalorder %s90, %s93
    %p102 = scmp.eq.s32.totalorder %s13, 3
    %p103 = por %p101, %p102
    %p104 = scmp.ne.s32.totalorder %s93, %s94
    %p105 = scmp.eq.s32.totalorder %s13, 0
    %p106 = por %p104, %p105
    %p107 = scmp.ne.s32.totalorder %s93, %s94
    %p108 = scmp.eq.s32.totalorder %s14, 3
    %p109 = por %p107, %p108
    %p111 = scmp.ne.s32.totalorder %s94, %s110
    %p112 = scmp.eq.s32.totalorder %s14, 0
    %p113 = por %p111, %p112
    %p114 = scmp.le.s32.totalorder 1, %s8
    %p115 = scmp.lt.s32.totalorder %s8, 5
    %p116 = pnand %p114, %p115
    %p117 = pneg %p116
    // Predicated region
    $region9: #{dectm_forward.3} parent=5 // pred_check
      _
    $region10: #{dectm_forward.3} parent=5 // pred_check_branch
      %119 = sbr.rel (%p116) target = $region12
    $region11: #{dectm_forward.3} parent=5 // pred_region
      %s120 = ssub.s32 %s8, 1
    $region12: #{dectm_forward.3} parent=5 // pred_fallthru
      _
    %p121 = scmp.lt.s32.totalorder %s8, 4
    // Predicated region
    $region13: #{dectm_forward.3} parent=5 // pred_check
      %p122 = pneg %p121
    $region14: #{dectm_forward.3} parent=5 // pred_check_branch
      %124 = sbr.rel (%p122) target = $region16
    $region15: #{dectm_forward.3} parent=5 // pred_region
      // Predicated region
      $region17: #{dectm_forward.3} parent=15 // pred_check
        %p125 = pneg %p44
      $region18: #{dectm_forward.3} parent=15 // pred_check_branch
        %127 = sbr.rel (%p125) target = $region20
      $region19: #{dectm_forward.3} parent=15 // pred_region
        %s128 = smul.u32 %s15, 2
        %s129 = sadd.s32 %s128, %s16
        %p130 = scmp.lt.s32.totalorder %s129, 3
        %s131 = scalar_select %p130, %s129, 3
        %s132 = smul.addr %s131, 4
        %s133 = scalar_lea.vmem %s0, %s132
        %s134 = smul.u32 %s15, 2
        %s135 = sadd.s32 %s134, %s16
      $region20: #{dectm_forward.3} parent=15 // pred_fallthru
        _
      // Predicated region
      $region21: #{dectm_forward.3} parent=15 // pred_check
        %p136 = pneg %p74
      $region22: #{dectm_forward.3} parent=15 // pred_check_branch
        %138 = sbr.rel (%p136) target = $region24
      $region23: #{dectm_forward.3} parent=15 // pred_region
        %s139 = smul.u32 %s15, 2
        %s140 = sadd.s32 %s139, %s16
        %s141 = smul.u32 4, %s140
        %p142 = scmp.lt.s32.totalorder %s141, 15
        %s143 = scalar_select %p142, %s141, 15
        %s144 = smul.addr %s143, 8
        %s145 = scalar_lea.vmem %s1, %s144
        %s146 = smul.u32 %s15, 2
        %s147 = sadd.s32 %s146, %s16
        %s148 = smul.u32 4, %s147
      $region24: #{dectm_forward.3} parent=15 // pred_fallthru
        _
    $region16: #{dectm_forward.3} parent=5 // pred_fallthru
      _
    %p149 = scmp.le.s32.totalorder 1, %s8
    %p150 = scmp.lt.s32.totalorder %s8, 5
    %p151 = pnand %p149, %p150
    %p152 = pneg %p151
    // Predicated region
    $region25: #{dectm_forward.3} parent=5 // pred_check
      _
    $region26: #{dectm_forward.3} parent=5 // pred_check_branch
      %154 = sbr.rel (%p151) target = $region28
    $region27: #{dectm_forward.3} parent=5 // pred_region
      %s155 = ssub.s32 %s8, 1
      %s156 = smul.u32 %s17, 2
      %s157 = sadd.s32 %s156, %s18
      %p158 = scmp.lt.s32.totalorder %s157, 3
      %s159 = scalar_select %p158, %s157, 3
      %s160 = smul.addr %s159, 4
      %s161 = scalar_lea.vmem %s0, %s160
      %p162 = pneg %p50
      %p163 = pneg %p47
      %s164 = smul.u32 %s17, 2
      %s165 = sadd.s32 %s164, %s18
      %s166 = smul.u32 4, %s165
      %p167 = scmp.lt.s32.totalorder %s166, 15
      %s168 = scalar_select %p167, %s166, 15
      %s169 = smul.addr %s168, 8
      %s170 = scalar_lea.vmem %s1, %s169
      %p171 = pneg %p80
      %p172 = pneg %p77
      %p173 = pneg %p106
      %p174 = pneg %p103
      %p175 = scmp.lt.s32.totalorder %s17, 1
      %s176 = scalar_select %p175, %s17, 1
      %s177 = smul.addr %s176, 8
      %s178 = scalar_lea.vmem %s2, %s177
      %s179 = smul.u32 %s17, 2
      %s180 = sadd.s32 %s179, %s18
      %p181 = scmp.lt.s32.totalorder %s180, 3
      %s182 = scalar_select %p181, %s180, 3
      %s183 = smul.addr %s182, 4
      %s184 = scalar_lea.vmem %s0, %s183
      %s185 = smul.u32 %s17, 2
      %s186 = sadd.s32 %s185, %s18
      %s187 = smul.u32 %s17, 2
      %s188 = sadd.s32 %s187, %s18
      %s189 = smul.u32 4, %s188
      %p190 = scmp.lt.s32.totalorder %s189, 15
      %s191 = scalar_select %p190, %s189, 15
      %s192 = smul.addr %s191, 8
      %s193 = scalar_lea.vmem %s1, %s192
      %s194 = smul.u32 %s17, 2
      %s195 = sadd.s32 %s194, %s18
      %s196 = smul.u32 4, %s195
      %p197 = scmp.lt.s32.totalorder %s17, 1
      %s198 = scalar_select %p197, %s17, 1
      %s199 = smul.addr %s198, 8
      %s200 = scalar_lea.vmem %s2, %s199
      %p202 = scmp.eq.s32.totalorder %s18, 0
      // Predicated region
      $region29: #{dectm_forward.3} parent=27 // pred_check
        %p203 = pneg %p202
      $region30: #{dectm_forward.3} parent=27 // pred_check_branch
        %205 = sbr.rel (%p203) target = $region32
      $region31: #{dectm_forward.3} parent=27 // pred_region
        %206 = vst [vmem:[%s200] sm:$0xff] 0.0
      $region32: #{dectm_forward.3} parent=27 // pred_fallthru
        _
      %v207 = vld [vmem:[%s193] sm:$0xff]
      %v208 = vld [vmem:[%s193 + $0x8] sm:$0xff]
      %v209 = vld [vmem:[%s193 + $0x10] sm:$0xff]
      %v210 = vld [vmem:[%s193 + $0x18] sm:$0xff]
      %v211 = vunpack.c.l.s8.bf16 %v207
      %v212 = vunpack.c.h.s8.bf16 %v207
      %v213 = vunpack.c.l.s8.bf16 %v208
      %v214 = vunpack.c.h.s8.bf16 %v208
      %v215 = vunpack.c.l.s8.bf16 %v209
      %v216 = vunpack.c.h.s8.bf16 %v209
      %v217 = vunpack.c.l.s8.bf16 %v210
      %v218 = vunpack.c.h.s8.bf16 %v210
      %v219 = vld [vmem:[%s200] sm:$0xff]
      %v220 = vld [vmem:[%s184] sm:$0xf]
      %221 = vmatprep.subr.bf16.mxu0 0
      %222 = vmatpush1.bf16.msra.mxu0 %v211
      %223 = vmatprep.subr.bf16.mxu0 0
      %224 = vmatpush1.bf16.msra.mxu0 %v212
      %225 = vmatprep.subr.bf16.mxu0 0
      %226 = vmatpush1.bf16.msra.mxu0 %v213
      %227 = vmatprep.subr.bf16.mxu0 0
      %228 = vmatpush1.bf16.msra.mxu0 %v214
      %229 = vmatprep.subr.bf16.mxu0 0
      %230 = vmatpush1.bf16.msra.mxu0 %v215
      %231 = vmatprep.subr.bf16.mxu0 0
      %232 = vmatpush1.bf16.msra.mxu0 %v216
      %233 = vmatprep.subr.bf16.mxu0 0
      %234 = vmatpush1.bf16.msra.mxu0 %v217
      %235 = vmatprep.subr.bf16.mxu0 0
      %236 = vmatpush1.bf16.msra.mxu0 %v218
      %237 = vmatprep.subr.bf16.mxu0 0
      %238 = vmatpush1.bf16.msra.mxu0 0
      %239 = vmatprep.subr.bf16.mxu0 0
      %240 = vmatpush1.bf16.msra.mxu0 0
      %241 = vmatprep.subr.bf16.mxu0 0
      %242 = vmatpush1.bf16.msra.mxu0 0
      %243 = vmatprep.subr.bf16.mxu0 0
      %244 = vmatpush1.bf16.msra.mxu0 0
      %245 = vmatprep.subr.bf16.mxu0 0
      %246 = vmatpush1.bf16.msra.mxu0 0
      %247 = vmatprep.subr.bf16.mxu0 0
      %248 = vmatpush1.bf16.msra.mxu0 0
      %249 = vmatprep.subr.bf16.mxu0 0
      %250 = vmatpush1.bf16.msra.mxu0 0
      %251 = vmatprep.subr.bf16.mxu0 0
      %252 = vmatpush1.bf16.msra.mxu0 0
      %253 = vmatprep.mubr.bf16.mxu0 0
      %254 = vmatmul.mubr.bf16.gmra.mrb[0].mxu0 %v220
      %v255 = vpop.f32.mrb[0].mxu0
      %v256 = vadd.f32 0.0, %v255
      %v257 = vpop.f32.mrb[0].mxu0
      %v258 = vpop.f32.mrb[0].mxu0
      %v259 = vpop.f32.mrb[0].mxu0
      %260 = vdwg.mxu0
      %v261 = vadd.f32 %v219, %v256
      %262 = vst [vmem:[%s200] sm:$0xff] %v261
      %p263 = scmp.lt.s32.totalorder %s17, 1
      %s264 = scalar_select %p263, %s17, 1
      %s265 = smul.addr %s264, 8
      %s266 = scalar_lea.vmem %s2, %s265
      // Predicated region
      $region33: #{dectm_forward.3} parent=27 // pred_check
        %p267 = pneg %p103
      $region34: #{dectm_forward.3} parent=27 // pred_check_branch
        %269 = sbr.rel (%p267) target = $region36
      $region35: #{dectm_forward.3} parent=27 // pred_region
        _
      $region36: #{dectm_forward.3} parent=27 // pred_fallthru
        _
    $region28: #{dectm_forward.3} parent=5 // pred_fallthru
      _
    %p270 = scmp.le.s32.totalorder 2, %s8
    // Predicated region
    $region37: #{dectm_forward.3} parent=5 // pred_check
      %p271 = pneg %p270
    $region38: #{dectm_forward.3} parent=5 // pred_check_branch
      %273 = sbr.rel (%p271) target = $region40
    $region39: #{dectm_forward.3} parent=5 // pred_region
      %s274 = ssub.s32 %s8, 2
      // Predicated region
      $region41: #{dectm_forward.3} parent=39 // pred_check
        %p275 = pneg %p109
      $region42: #{dectm_forward.3} parent=39 // pred_check_branch
        %277 = sbr.rel (%p275) target = $region44
      $region43: #{dectm_forward.3} parent=39 // pred_region
        %p278 = scmp.lt.s32.totalorder %s19, 1
        %s279 = scalar_select %p278, %s19, 1
        %s280 = smul.addr %s279, 8
        %s281 = scalar_lea.vmem %s2, %s280
      $region44: #{dectm_forward.3} parent=39 // pred_fallthru
        _
    $region40: #{dectm_forward.3} parent=5 // pred_fallthru
      _
  $region6: #{dectm_forward.3} parent=0 // loop_footer
    %s12 = sadd.s32 1, %s8
  $region7: #{dectm_forward.3} parent=0 // loop_footer_branch
    %7 = sbr.rel target = $region3
  $region8: #{dectm_forward.3} parent=0 // loop_exit
    _

// kernel: dectm_forward.4
$region0: #{dectm_forward.4}
  #allocation0 [shape = 'u32[]', space=smem, size = 0x4, offset = 0x4, fixed_abs, tag = 'smem constant byte address 0x4 - core index']
  #allocation1 [shape = 'u32[144,128]{1,0:T(1,128)}', space=vmem, size = 0x12000, scoped, tag = 'internal scratch']
  %s0 = inlined_call_operand.vmem [shape: f32[8,128], index: 0, kind: input, shape index: {}]
  %s1 = inlined_call_operand.vmem [shape: f32[1,128], index: 1, kind: input, shape index: {}]
  %s2 = inlined_call_operand.vmem [shape: bf16[128,128], index: 2, kind: input, shape index: {}]
  %s3 = inlined_call_operand.vmem [shape: f32[1,128], index: 3, kind: input, shape index: {}]
  %s4 = inlined_call_operand.vmem [shape: bf16[128,256], index: 4, kind: input, shape index: {}]
  %s5 = inlined_call_operand.vmem [shape: f32[1,256], index: 5, kind: input, shape index: {}]
  %s6 = inlined_call_operand.vmem [shape: f32[1,32], index: 6, kind: input, shape index: {}]
  %s7 = inlined_call_operand.vmem [shape: f32[1,32], index: 7, kind: input, shape index: {}]
  %s8 = inlined_call_operand.vmem [shape: f32[1,32], index: 8, kind: input, shape index: {}]
  %s9 = inlined_call_operand.vmem [shape: f32[8,32], index: 9, kind: input, shape index: {}]
  %s10 = inlined_call_operand.vmem [shape: f32[8,128], index: 10, kind: input, shape index: {}]
  %s11 = inlined_call_operand.vmem [shape: f32[8,32], index: 11, kind: input, shape index: {}]
  %s12 = inlined_call_operand.vmem [shape: f32[8,32], index: 12, kind: output, shape index: {0}]
  %s13 = inlined_call_operand.vmem [shape: f32[8,1], index: 13, kind: output, shape index: {1}]
  %14 = xla_tuple %s12, %s13
  %s15 = sld [smem:[#allocation0]]
  $region66: #{dectm_forward.4} parent=0
    _
  %s17 = ssub.s32 1, %s15
  %s18 = scalar_select 0, %s17, %s15
  // Predicated region
  $region2: #{dectm_forward.4} parent=0 // pred_check
    _
  $region3: #{dectm_forward.4} parent=0 // pred_check_branch
    %20 = sbr.rel (0) target = $region5
  $region4: #{dectm_forward.4} parent=0 // pred_region
    _
  $region5: #{dectm_forward.4} parent=0 // pred_fallthru
    _
  // Predicated region
  $region6: #{dectm_forward.4} parent=0 // pred_check
    _
  $region7: #{dectm_forward.4} parent=0 // pred_check_branch
    %22 = sbr.rel (0) target = $region9
  $region8: #{dectm_forward.4} parent=0 // pred_region
    _
  $region9: #{dectm_forward.4} parent=0 // pred_fallthru
    _
  // Predicated region
  $region10: #{dectm_forward.4} parent=0 // pred_check
    _
  $region11: #{dectm_forward.4} parent=0 // pred_check_branch
    %24 = sbr.rel (0) target = $region13
  $region12: #{dectm_forward.4} parent=0 // pred_region
    _
  $region13: #{dectm_forward.4} parent=0 // pred_fallthru
    _
  // Predicated region
  $region14: #{dectm_forward.4} parent=0 // pred_check
    _
  $region15: #{dectm_forward.4} parent=0 // pred_check_branch
    %26 = sbr.rel (0) target = $region17
  $region16: #{dectm_forward.4} parent=0 // pred_region
    _
  $region17: #{dectm_forward.4} parent=0 // pred_fallthru
    _
  // Predicated region
  $region18: #{dectm_forward.4} parent=0 // pred_check
    _
  $region19: #{dectm_forward.4} parent=0 // pred_check_branch
    %28 = sbr.rel (0) target = $region21
  $region20: #{dectm_forward.4} parent=0 // pred_region
    _
  $region21: #{dectm_forward.4} parent=0 // pred_fallthru
    _
  // Predicated region
  $region22: #{dectm_forward.4} parent=0 // pred_check
    _
  $region23: #{dectm_forward.4} parent=0 // pred_check_branch
    %30 = sbr.rel (0) target = $region25
  $region24: #{dectm_forward.4} parent=0 // pred_region
    _
  $region25: #{dectm_forward.4} parent=0 // pred_fallthru
    _
  // Predicated region
  $region26: #{dectm_forward.4} parent=0 // pred_check
    _
  $region27: #{dectm_forward.4} parent=0 // pred_check_branch
    %32 = sbr.rel (0) target = $region29
  $region28: #{dectm_forward.4} parent=0 // pred_region
    _
  $region29: #{dectm_forward.4} parent=0 // pred_fallthru
    _
  // Predicated region
  $region30: #{dectm_forward.4} parent=0 // pred_check
    _
  $region31: #{dectm_forward.4} parent=0 // pred_check_branch
    %34 = sbr.rel (0) target = $region33
  $region32: #{dectm_forward.4} parent=0 // pred_region
    _
  $region33: #{dectm_forward.4} parent=0 // pred_fallthru
    _
  // Predicated region
  $region34: #{dectm_forward.4} parent=0 // pred_check
    _
  $region35: #{dectm_forward.4} parent=0 // pred_check_branch
    %36 = sbr.rel (0) target = $region37
  $region36: #{dectm_forward.4} parent=0 // pred_region
    _
  $region37: #{dectm_forward.4} parent=0 // pred_fallthru
    _
  // Predicated region
  $region38: #{dectm_forward.4} parent=0 // pred_check
    _
  $region39: #{dectm_forward.4} parent=0 // pred_check_branch
    %38 = sbr.rel (0) target = $region41
  $region40: #{dectm_forward.4} parent=0 // pred_region
    _
  $region41: #{dectm_forward.4} parent=0 // pred_fallthru
    _
  // Predicated region
  $region42: #{dectm_forward.4} parent=0 // pred_check
    _
  $region43: #{dectm_forward.4} parent=0 // pred_check_branch
    %40 = sbr.rel (0) target = $region45
  $region44: #{dectm_forward.4} parent=0 // pred_region
    _
  $region45: #{dectm_forward.4} parent=0 // pred_fallthru
    _
  // Predicated region
  $region46: #{dectm_forward.4} parent=0 // pred_check
    _
  $region47: #{dectm_forward.4} parent=0 // pred_check_branch
    %42 = sbr.rel (0) target = $region49
  $region48: #{dectm_forward.4} parent=0 // pred_region
    _
  $region49: #{dectm_forward.4} parent=0 // pred_fallthru
    _
  %v44 = vld [vmem:[%s0] sm:$0xff]
  %v45 = vld [vmem:[%s1] sm:$0x1]
  %v47 = vlaneseq
  %v48 = vshrl.u32 %v47, 7
  %v49 = vsub.s32 0, %v48
  %v50 = vrot.slane %v45, %v49
  %v52 = vadd.f32 %v44, %v50
  %v53 = vmax.f32 %v52, 0.0
  %v54 = vand.u32 2147483647, %v52
  %v55 = vsub.f32 0.0, %v54
  %v56 = vmul.f32 %v55, 1.442695
  %v57 = vpow.pop %v56
  %v58 = vadd.f32 %v57, 1.0
  %v59 = vlog2.pop %v58
  %v60 = vmul.f32 %v59, 0.6931472
  %v61 = vadd.f32 %v53, %v60
  %v62 = vpack.c.bf16 %v61, %v61
  %v63 = vld [vmem:[%s2] sm:$0xf]
  %v64 = vld [vmem:[%s2 + $0x4] sm:$0xf]
  %v65 = vld [vmem:[%s2 + $0x8] sm:$0xf]
  %v66 = vld [vmem:[%s2 + $0xc] sm:$0xf]
  %v67 = vld [vmem:[%s2 + $0x10] sm:$0xf]
  %v68 = vld [vmem:[%s2 + $0x14] sm:$0xf]
  %v69 = vld [vmem:[%s2 + $0x18] sm:$0xf]
  %v70 = vld [vmem:[%s2 + $0x1c] sm:$0xf]
  %v71 = vld [vmem:[%s2 + $0x20] sm:$0xf]
  %v72 = vld [vmem:[%s2 + $0x24] sm:$0xf]
  %v73 = vld [vmem:[%s2 + $0x28] sm:$0xf]
  %v74 = vld [vmem:[%s2 + $0x2c] sm:$0xf]
  %v75 = vld [vmem:[%s2 + $0x30] sm:$0xf]
  %v76 = vld [vmem:[%s2 + $0x34] sm:$0xf]
  %v77 = vld [vmem:[%s2 + $0x38] sm:$0xf]
  %v78 = vld [vmem:[%s2 + $0x3c] sm:$0xf]
  %v79 = vld [vmem:[%s3] sm:$0x1]
  %v81 = vlaneseq
  %v82 = vshrl.u32 %v81, 7
  %v83 = vsub.s32 0, %v82
  %v84 = vrot.slane %v79, %v83
  %v102 = vunpack.c.l.b16 %v63
  %v103 = vunpack.c.l.b16 %v64
  %v104 = vunpack.c.l.b16 %v65
  %v105 = vunpack.c.l.b16 %v66
  %v106 = vunpack.c.l.b16 %v67
  %v107 = vunpack.c.l.b16 %v68
  %v108 = vunpack.c.l.b16 %v69
  %v109 = vunpack.c.l.b16 %v70
  %v110 = vunpack.c.l.b16 %v71
  %v111 = vunpack.c.l.b16 %v72
  %v112 = vunpack.c.l.b16 %v73
  %v113 = vunpack.c.l.b16 %v74
  %v114 = vunpack.c.l.b16 %v75
  %v115 = vunpack.c.l.b16 %v76
  %v116 = vunpack.c.l.b16 %v77
  %v117 = vunpack.c.l.b16 %v78
  %v118 = vpack.c.b16 %v103, %v102
  %v119 = vpack.c.b16 %v105, %v104
  %v120 = vpack.c.b16 %v107, %v106
  %v121 = vpack.c.b16 %v109, %v108
  %v122 = vpack.c.b16 %v111, %v110
  %v123 = vpack.c.b16 %v113, %v112
  %v124 = vpack.c.b16 %v115, %v114
  %v125 = vpack.c.b16 %v117, %v116
  %134 = vmatprep.subr.bf16.mxu0 0
  %135 = vmatpush1.bf16.msra.mxu0 %v118
  %136 = vmatprep.subr.bf16.mxu0 0
  %137 = vmatpush1.bf16.msra.mxu0 %v119
  %138 = vmatprep.subr.bf16.mxu0 0
  %139 = vmatpush1.bf16.msra.mxu0 %v120
  %140 = vmatprep.subr.bf16.mxu0 0
  %141 = vmatpush1.bf16.msra.mxu0 %v121
  %142 = vmatprep.subr.bf16.mxu0 0
  %143 = vmatpush1.bf16.msra.mxu0 %v122
  %144 = vmatprep.subr.bf16.mxu0 0
  %145 = vmatpush1.bf16.msra.mxu0 %v123
  %146 = vmatprep.subr.bf16.mxu0 0
  %147 = vmatpush1.bf16.msra.mxu0 %v124
  %148 = vmatprep.subr.bf16.mxu0 0
  %149 = vmatpush1.bf16.msra.mxu0 %v125
  %150 = vmatprep.subr.bf16.mxu0 0
  %151 = vmatpush1.bf16.msra.mxu0 0
  %152 = vmatprep.subr.bf16.mxu0 0
  %153 = vmatpush1.bf16.msra.mxu0 0
  %154 = vmatprep.subr.bf16.mxu0 0
  %155 = vmatpush1.bf16.msra.mxu0 0
  %156 = vmatprep.subr.bf16.mxu0 0
  %157 = vmatpush1.bf16.msra.mxu0 0
  %158 = vmatprep.subr.bf16.mxu0 0
  %159 = vmatpush1.bf16.msra.mxu0 0
  %160 = vmatprep.subr.bf16.mxu0 0
  %161 = vmatpush1.bf16.msra.mxu0 0
  %162 = vmatprep.subr.bf16.mxu0 0
  %163 = vmatpush1.bf16.msra.mxu0 0
  %164 = vmatprep.subr.bf16.mxu0 0
  %165 = vmatpush1.bf16.msra.mxu0 0
  %166 = vmatprep.mubr.bf16.mxu0 0
  %167 = vmatmul.mubr.bf16.gmra.mrb[0].mxu0 %v62
  %v168 = vpop.f32.mrb[0].mxu0
  %v169 = vadd.f32 %v84, %v168
  %v170 = vpop.f32.mrb[0].mxu0
  %v171 = vpop.f32.mrb[0].mxu0
  %v172 = vpop.f32.mrb[0].mxu0
  %173 = vdwg.mxu0
  %v174 = vmax.f32 %v169, 0.0
  %v175 = vand.u32 2147483647, %v169
  %v176 = vsub.f32 0.0, %v175
  %v177 = vmul.f32 %v176, 1.442695
  %v178 = vpow.pop %v177
  %v179 = vadd.f32 %v178, 1.0
  %v180 = vlog2.pop %v179
  %v181 = vmul.f32 %v180, 0.6931472
  %v182 = vadd.f32 %v174, %v181
  %v183 = vld [vmem:[%s10] sm:$0xff]
  %v184 = vmul.f32 %v182, %v183
  %v185 = vpack.c.bf16 %v184, %v184
  %v186 = vld [vmem:[%s4] sm:$0xff]
  %v187 = vld [vmem:[%s4 + $0x8] sm:$0xff]
  %v188 = vld [vmem:[%s4 + $0x10] sm:$0xff]
  %v189 = vld [vmem:[%s4 + $0x18] sm:$0xff]
  %v190 = vld [vmem:[%s4 + $0x20] sm:$0xff]
  %v191 = vld [vmem:[%s4 + $0x28] sm:$0xff]
  %v192 = vld [vmem:[%s4 + $0x30] sm:$0xff]
  %v193 = vld [vmem:[%s4 + $0x38] sm:$0xff]
  %v194 = vld [vmem:[%s4 + $0x40] sm:$0xff]
  %v195 = vld [vmem:[%s4 + $0x48] sm:$0xff]
  %v196 = vld [vmem:[%s4 + $0x50] sm:$0xff]
  %v197 = vld [vmem:[%s4 + $0x58] sm:$0xff]
  %v198 = vld [vmem:[%s4 + $0x60] sm:$0xff]
  %v199 = vld [vmem:[%s4 + $0x68] sm:$0xff]
  %v200 = vld [vmem:[%s4 + $0x70] sm:$0xff]
  %v201 = vld [vmem:[%s4 + $0x78] sm:$0xff]
  %v202 = vld [vmem:[%s5] sm:$0x3]
  %v204 = vlaneseq
  %v205 = vshrl.u32 %v204, 7
  %v206 = vsub.s32 0, %v205
  %v207 = vrot.slane %v202, %v206
  %v208 = vlaneseq
  %v209 = vshrl.u32 %v208, 7
  %v210 = vsub.s32 1, %v209
  %v211 = vrot.slane %v202, %v210
  %v230 = vunpack.c.l.b16 %v186
  %v231 = vunpack.c.h.b16 %v186
  %v232 = vunpack.c.l.b16 %v187
  %v233 = vunpack.c.h.b16 %v187
  %v234 = vunpack.c.l.b16 %v188
  %v235 = vunpack.c.h.b16 %v188
  %v236 = vunpack.c.l.b16 %v189
  %v237 = vunpack.c.h.b16 %v189
  %v238 = vunpack.c.l.b16 %v190
  %v239 = vunpack.c.h.b16 %v190
  %v240 = vunpack.c.l.b16 %v191
  %v241 = vunpack.c.h.b16 %v191
  %v242 = vunpack.c.l.b16 %v192
  %v243 = vunpack.c.h.b16 %v192
  %v244 = vunpack.c.l.b16 %v193
  %v245 = vunpack.c.h.b16 %v193
  %v246 = vunpack.c.l.b16 %v194
  %v247 = vunpack.c.h.b16 %v194
  %v248 = vunpack.c.l.b16 %v195
  %v249 = vunpack.c.h.b16 %v195
  %v250 = vunpack.c.l.b16 %v196
  %v251 = vunpack.c.h.b16 %v196
  %v252 = vunpack.c.l.b16 %v197
  %v253 = vunpack.c.h.b16 %v197
  %v254 = vunpack.c.l.b16 %v198
  %v255 = vunpack.c.h.b16 %v198
  %v256 = vunpack.c.l.b16 %v199
  %v257 = vunpack.c.h.b16 %v199
  %v258 = vunpack.c.l.b16 %v200
  %v259 = vunpack.c.h.b16 %v200
  %v260 = vunpack.c.l.b16 %v201
  %v261 = vunpack.c.h.b16 %v201
  %v262 = vpack.c.b16 %v232, %v230
  %v263 = vpack.c.b16 %v233, %v231
  %v264 = vpack.c.b16 %v236, %v234
  %v265 = vpack.c.b16 %v237, %v235
  %v266 = vpack.c.b16 %v240, %v238
  %v267 = vpack.c.b16 %v241, %v239
  %v268 = vpack.c.b16 %v244, %v242
  %v269 = vpack.c.b16 %v245, %v243
  %v270 = vpack.c.b16 %v248, %v246
  %v271 = vpack.c.b16 %v249, %v247
  %v272 = vpack.c.b16 %v252, %v250
  %v273 = vpack.c.b16 %v253, %v251
  %v274 = vpack.c.b16 %v256, %v254
  %v275 = vpack.c.b16 %v257, %v255
  %v276 = vpack.c.b16 %v260, %v258
  %v277 = vpack.c.b16 %v261, %v259
  %294 = vmatprep.subr.bf16.mxu0 %v263
  %295 = vmatpush1.bf16.msra.mxu0 %v262
  %296 = vmatprep.subr.bf16.mxu0 %v265
  %297 = vmatpush1.bf16.msra.mxu0 %v264
  %298 = vmatprep.subr.bf16.mxu0 %v267
  %299 = vmatpush1.bf16.msra.mxu0 %v266
  %300 = vmatprep.subr.bf16.mxu0 %v269
  %301 = vmatpush1.bf16.msra.mxu0 %v268
  %302 = vmatprep.subr.bf16.mxu0 %v271
  %303 = vmatpush1.bf16.msra.mxu0 %v270
  %304 = vmatprep.subr.bf16.mxu0 %v273
  %305 = vmatpush1.bf16.msra.mxu0 %v272
  %306 = vmatprep.subr.bf16.mxu0 %v275
  %307 = vmatpush1.bf16.msra.mxu0 %v274
  %308 = vmatprep.subr.bf16.mxu0 %v277
  %309 = vmatpush1.bf16.msra.mxu0 %v276
  %310 = vmatprep.subr.bf16.mxu0 0
  %311 = vmatpush1.bf16.msra.mxu0 0
  %312 = vmatprep.subr.bf16.mxu0 0
  %313 = vmatpush1.bf16.msra.mxu0 0
  %314 = vmatprep.subr.bf16.mxu0 0
  %315 = vmatpush1.bf16.msra.mxu0 0
  %316 = vmatprep.subr.bf16.mxu0 0
  %317 = vmatpush1.bf16.msra.mxu0 0
  %318 = vmatprep.subr.bf16.mxu0 0
  %319 = vmatpush1.bf16.msra.mxu0 0
  %320 = vmatprep.subr.bf16.mxu0 0
  %321 = vmatpush1.bf16.msra.mxu0 0
  %322 = vmatprep.subr.bf16.mxu0 0
  %323 = vmatpush1.bf16.msra.mxu0 0
  %324 = vmatprep.subr.bf16.mxu0 0
  %325 = vmatpush1.bf16.msra.mxu0 0
  %326 = vmatprep.mubr.bf16.mxu0 0
  %327 = vmatmul.mubr.bf16.gmra.mrb[0].mxu0 %v185
  %v328 = vpop.f32.mrb[0].mxu0
  %v329 = vadd.f32 %v207, %v328
  %v330 = vpop.f32.mrb[0].mxu0
  %v331 = vadd.f32 %v211, %v330
  %v332 = vpop.f32.mrb[0].mxu0
  %v333 = vpop.f32.mrb[0].mxu0
  %334 = vdwg.mxu0
  %v335 = vrot.slane %v329, 4
  %v336 = vadd.f32 %v329, %v335
  %v337 = vrot.slane %v336, 2
  %v338 = vadd.f32 %v336, %v337
  %v339 = vrot.slane %v338, 1
  %v340 = vadd.f32 %v338, %v339
  %v341 = vrot.slane %v331, 4
  %v342 = vadd.f32 %v331, %v341
  %v343 = vrot.slane %v342, 2
  %v344 = vadd.f32 %v342, %v343
  %v345 = vrot.slane %v344, 1
  %v346 = vadd.f32 %v344, %v345
  %v347 = vrcp.pop 8.0
  %v348 = vmul.f32 %v340, %v347
  %v349 = vmul.f32 %v346, %v347
  %v350 = vsub.f32 %v329, %v348
  %v351 = vsub.f32 %v331, %v349
  %v352 = vmul.f32 %v350, %v350
  %v353 = vmul.f32 %v351, %v351
  %v354 = vrot.slane %v352, 4
  %v355 = vadd.f32 %v352, %v354
  %v356 = vrot.slane %v355, 2
  %v357 = vadd.f32 %v355, %v356
  %v358 = vrot.slane %v357, 1
  %v359 = vadd.f32 %v357, %v358
  %v360 = vrot.slane %v353, 4
  %v361 = vadd.f32 %v353, %v360
  %v362 = vrot.slane %v361, 2
  %v363 = vadd.f32 %v361, %v362
  %v364 = vrot.slane %v363, 1
  %v365 = vadd.f32 %v363, %v364
  %v366 = vmul.f32 %v359, %v347
  %v367 = vmul.f32 %v365, %v347
  %v368 = vadd.f32 %v366, 0.001
  %v369 = vadd.f32 %v367, 0.001
  %v370 = vrsqrt.pop %v368
  %v371 = vrsqrt.pop %v369
  %v372 = vmul.f32 %v350, %v370
  %v373 = vmul.f32 %v351, %v371
  %v374 = vld [vmem:[%s9] sm:$0xff]
  %v375 = vmul.f32 %v373, 0.5
  %v376 = vmul.f32 %v375, 1.442695
  %v377 = vpow.pop %v376
  %v378 = vmul.f32 %v374, %v377
  %v379 = vadd.f32 %v372, %v378
  %vm380 = vcmask 261120
  %v381 = vsel %vm380, %v379, -inf
  %382 = vmax.xlane.f32.xlu0 %v381
  %v383 = vpop.xlane.xlu0 %382
  %v384 = vsub.f32 %v379, %v383
  %v385 = vmul.f32 %v384, 1.442695
  %v386 = vpow.pop %v385
  %v387 = vsel %vm380, %v386, 0.0
  %388 = vadd.xlane.f32.xlu0 %v387
  %v389 = vpop.xlane.xlu0 %388
  %v390 = vrcp.pop %v389
  %v391 = vmul.f32 %v386, %v390
  %v392 = vld [vmem:[%s11] sm:$0xff]
  %v393 = vmul.f32 %v391, %v392
  %v394 = vmul.f32 %v393, %v393
  %v395 = vsel %vm380, %v394, 0.0
  %396 = vadd.xlane.f32.xlu0 %v395
  %v397 = vpop.xlane.xlu0 %396
  %v398 = vmax.f32 %v397, 1e-24
  %v399 = vrsqrt.pop %v398
  %v400 = vmul.f32 %v393, %v399
  %401 = vst.msk [vmem:[%s12] sm:$0xff] %vm380, %v400
  %v402 = vmul.f32 %v373, 1.442695
  %v403 = vpow.pop %v402
  %v404 = vld [vmem:[%s6] sm:$0x1]
  %v406 = vlaneseq
  %v407 = vshrl.u32 %v406, 7
  %v408 = vsub.s32 0, %v407
  %v409 = vrot.slane %v404, %v408
  %v411 = vsub.f32 %v372, %v409
  %v412 = vld [vmem:[%s7] sm:$0x1]
  %v414 = vlaneseq
  %v415 = vshrl.u32 %v414, 7
  %v416 = vsub.s32 0, %v415
  %v417 = vrot.slane %v412, %v416
  %v419 = vmul.f32 %v403, %v417
  %v420 = vmul.f32 %v411, %v411
  %v421 = vmul.f32 %v420, %v417
  %v422 = vadd.f32 %v419, %v421
  %v423 = vld [vmem:[%s8] sm:$0x1]
  %v425 = vlaneseq
  %v426 = vshrl.u32 %v425, 7
  %v427 = vsub.s32 0, %v426
  %v428 = vrot.slane %v423, %v427
  %v430 = vadd.f32 %v422, %v428
  %v431 = vsub.f32 %v430, %v373
  %v432 = vsel %vm380, %v431, 0.0
  %433 = vadd.xlane.f32.xlu0 %v432
  %v434 = vpop.xlane.xlu0 %433
  %v435 = vsub.f32 %v434, 32.0
  %v436 = vmul.f32 %v435, 0.5
  %vm437 = vcmask 7168
  %438 = vst.msk [vmem:[%s13] sm:$0xff] %vm437, %v436
  // Predicated region
  $region50: #{dectm_forward.4} parent=0 // pred_check
    _
  $region51: #{dectm_forward.4} parent=0 // pred_check_branch
    %440 = sbr.rel (0) target = $region53
  $region52: #{dectm_forward.4} parent=0 // pred_region
    _
  $region53: #{dectm_forward.4} parent=0 // pred_fallthru
    _
  // Predicated region
  $region54: #{dectm_forward.4} parent=0 // pred_check
    _
  $region55: #{dectm_forward.4} parent=0 // pred_check_branch
    %442 = sbr.rel (0) target = $region57
  $region56: #{dectm_forward.4} parent=0 // pred_region
    _
  $region57: #{dectm_forward.4} parent=0 // pred_fallthru
    _
  // Predicated region
  $region58: #{dectm_forward.4} parent=0 // pred_check
    _
  $region59: #{dectm_forward.4} parent=0 // pred_check_branch
    %444 = sbr.rel (0) target = $region61
  $region60: #{dectm_forward.4} parent=0 // pred_region
    _
  $region61: #{dectm_forward.4} parent=0 // pred_fallthru
    _
  // Predicated region
  $region62: #{dectm_forward.4} parent=0 // pred_check
    _
  $region63: #{dectm_forward.4} parent=0 // pred_check_branch
    %446 = sbr.rel (0) target = $region65
  $region64: #{dectm_forward.4} parent=0 // pred_region
    _
  $region65: #{dectm_forward.4} parent=0 // pred_fallthru
    _

// kernel: dectm_forward.5
$region0: #{dectm_forward.5}
  #allocation0 [shape = 'u32[]', space=smem, size = 0x4, offset = 0x4, fixed_abs, tag = 'smem constant byte address 0x4 - core index']
  #allocation1 [shape = 'u32[144,128]{1,0:T(1,128)}', space=vmem, size = 0x12000, scoped, tag = 'internal scratch']
  #allocation2 [shape = 'f32[8,1]{1,0:T(8,128)}', space=vmem, size = 0x1000, scoped, tag = 'scratch operand']
  #allocation3 [shape = 'f32[8,1]{1,0:T(8,128)}', space=vmem, size = 0x1000, scoped, tag = 'scratch operand']
  #allocation4 [shape = 'f32[8,1]{1,0:T(8,128)}', space=vmem, size = 0x1000, scoped, tag = 'scratch operand']
  #allocation5 [shape = 'f32[8,1]{1,0:T(8,128)}', space=vmem, size = 0x1000, scoped, tag = 'scratch operand']
  %s0 = inlined_call_operand.vmem [shape: bf16[8,512], index: 0, kind: input, shape index: {}]
  %s1 = inlined_call_operand.vmem [shape: s8[32,512], index: 1, kind: input, shape index: {}]
  %s2 = inlined_call_operand.vmem [shape: bf16[8,32], index: 2, kind: input, shape index: {}]
  %s3 = inlined_call_operand.vmem [shape: bf16[1,32], index: 3, kind: input, shape index: {}]
  %s4 = inlined_call_operand.vmem [shape: f32[2,8,4], index: 4, kind: output, shape index: {}]
  %s5 = sld [smem:[#allocation0]]
  $region57: #{dectm_forward.5} parent=0
    _
  %s7 = ssub.s32 1, %s5
  %s8 = scalar_select 0, %s7, %s5
  loop: start=0, step=1, limit=6
  $region2: #{dectm_forward.5} parent=0 // loop_pre_header
    _
  $region3: #{dectm_forward.5} parent=0 // loop_header
    %s10 = sphi 0, %s14
    %p11 = scmp.ge.s32.totalorder %s10, 6
    %s17 = sphi 0, %s29
    %s18 = sphi 0, %s25
    %s19 = sphi 0, %s17
    %s20 = sphi 0, %s18
    %s21 = sphi 0, %s19
    %s22 = sphi 0, %s20
    %s36 = sphi 0, %s38
    %s39 = sphi 0, %s36
    %s40 = sphi 0, %s39
    %s56 = sphi 0, %s40
    %s66 = sphi 0, %s68
    %s69 = sphi 0, %s66
    %s70 = sphi 0, %s69
    %s86 = sphi 0, %s70
    %s90 = sphi 0, %s90
    %s92 = sphi 0, %s90
    %s93 = sphi 0, %s92
    %s107 = sphi 0, %s93
    %s111 = sphi 0, %s111
    %s113 = sphi 0, %s111
    %s114 = sphi 0, %s113
    %s128 = sphi 0, %s114
    %s134 = sphi 0, %s136
    %s137 = sphi 0, %s134
    %s138 = sphi 0, %s137
    %s154 = sphi 0, %s138
  $region4: #{dectm_forward.5} parent=0 // loop_header_branch
    %13 = sbr.rel (%p11) target = $region8
  $region5: #{dectm_forward.5} parent=0 // loop_body
    %s15 = ssub.s32 %s10, 1
    %s16 = ssub.s32 %s10, 2
    %s23 = sadd.s32 1, %s18
    %p24 = scmp.ge.s32.totalorder %s23, 2
    %s25 = scalar_select %p24, 0, %s23
    %s26 = sadd.s32 1, %s17
    %s27 = scalar_select %p24, %s26, %s17
    %p28 = scmp.ge.s32.totalorder %s27, 2
    %s29 = scalar_select %p28, 0, %s27
    %s30 = smul.u32 %s17, 2
    %s31 = sadd.s32 %s30, %s18
    %s32 = smul.u32 %s29, 2
    %s33 = sadd.s32 %s32, %s25
    %s34 = ssub.s32 %s31, %s33
    %p35 = scmp.eq.s32.totalorder %s34, 0
    %s37 = sadd.s32 %s36, 1
    %s38 = scalar_select %p35, %s36, %s37
    %p41 = pneg %p35
    %p42 = scmp.eq.s32.totalorder %s10, 3
    %p43 = por %p41, %p42
    %p44 = scmp.ne.s32.totalorder %s36, %s39
    %p45 = scmp.eq.s32.totalorder %s10, 0
    %p46 = por %p44, %p45
    %p47 = scmp.ne.s32.totalorder %s36, %s39
    %p48 = scmp.eq.s32.totalorder %s15, 3
    %p49 = por %p47, %p48
    %p50 = scmp.ne.s32.totalorder %s39, %s40
    %p51 = scmp.eq.s32.totalorder %s15, 0
    %p52 = por %p50, %p51
    %p53 = scmp.ne.s32.totalorder %s39, %s40
    %p54 = scmp.eq.s32.totalorder %s16, 3
    %p55 = por %p53, %p54
    %p57 = scmp.ne.s32.totalorder %s40, %s56
    %p58 = scmp.eq.s32.totalorder %s16, 0
    %p59 = por %p57, %p58
    %s60 = smul.u32 %s17, 2
    %s61 = sadd.s32 %s60, %s18
    %s62 = smul.u32 %s29, 2
    %s63 = sadd.s32 %s62, %s25
    %s64 = ssub.s32 %s61, %s63
    %p65 = scmp.eq.s32.totalorder %s64, 0
    %s67 = sadd.s32 %s66, 1
    %s68 = scalar_select %p65, %s66, %s67
    %p71 = pneg %p65
    %p72 = scmp.eq.s32.totalorder %s10, 3
    %p73 = por %p71, %p72
    %p74 = scmp.ne.s32.totalorder %s66, %s69
    %p75 = scmp.eq.s32.totalorder %s10, 0
    %p76 = por %p74, %p75
    %p77 = scmp.ne.s32.totalorder %s66, %s69
    %p78 = scmp.eq.s32.totalorder %s15, 3
    %p79 = por %p77, %p78
    %p80 = scmp.ne.s32.totalorder %s69, %s70
    %p81 = scmp.eq.s32.totalorder %s15, 0
    %p82 = por %p80, %p81
    %p83 = scmp.ne.s32.totalorder %s69, %s70
    %p84 = scmp.eq.s32.totalorder %s16, 3
    %p85 = por %p83, %p84
    %p87 = scmp.ne.s32.totalorder %s70, %s86
    %p88 = scmp.eq.s32.totalorder %s16, 0
    %p89 = por %p87, %p88
    %s91 = sadd.s32 %s90, 1
    %p94 = scmp.eq.s32.totalorder %s10, 3
    %p95 = scmp.ne.s32.totalorder %s90, %s92
    %p96 = scmp.eq.s32.totalorder %s10, 0
    %p97 = por %p95, %p96
    %p98 = scmp.ne.s32.totalorder %s90, %s92
    %p99 = scmp.eq.s32.totalorder %s15, 3
    %p100 = por %p98, %p99
    %p101 = scmp.ne.s32.totalorder %s92, %s93
    %p102 = scmp.eq.s32.totalorder %s15, 0
    %p103 = por %p101, %p102
    %p104 = scmp.ne.s32.totalorder %s92, %s93
    %p105 = scmp.eq.s32.totalorder %s16, 3
    %p106 = por %p104, %p105
    %p108 = scmp.ne.s32.totalorder %s93, %s107
    %p109 = scmp.eq.s32.totalorder %s16, 0
    %p110 = por %p108, %p109
    %s112 = sadd.s32 %s111, 1
    %p115 = scmp.eq.s32.totalorder %s10, 3
    %p116 = scmp.ne.s32.totalorder %s111, %s113
    %p117 = scmp.eq.s32.totalorder %s10, 0
    %p118 = por %p116, %p117
    %p119 = scmp.ne.s32.totalorder %s111, %s113
    %p120 = scmp.eq.s32.totalorder %s15, 3
    %p121 = por %p119, %p120
    %p122 = scmp.ne.s32.totalorder %s113, %s114
    %p123 = scmp.eq.s32.totalorder %s15, 0
    %p124 = por %p122, %p123
    %p125 = scmp.ne.s32.totalorder %s113, %s114
    %p126 = scmp.eq.s32.totalorder %s16, 3
    %p127 = por %p125, %p126
    %p129 = scmp.ne.s32.totalorder %s114, %s128
    %p130 = scmp.eq.s32.totalorder %s16, 0
    %p131 = por %p129, %p130
    %s132 = ssub.s32 %s17, %s29
    %p133 = scmp.eq.s32.totalorder %s132, 0
    %s135 = sadd.s32 %s134, 1
    %s136 = scalar_select %p133, %s134, %s135
    %p139 = pneg %p133
    %p140 = scmp.eq.s32.totalorder %s10, 3
    %p141 = por %p139, %p140
    %p142 = scmp.ne.s32.totalorder %s134, %s137
    %p143 = scmp.eq.s32.totalorder %s10, 0
    %p144 = por %p142, %p143
    %p145 = scmp.ne.s32.totalorder %s134, %s137
    %p146 = scmp.eq.s32.totalorder %s15, 3
    %p147 = por %p145, %p146
    %p148 = scmp.ne.s32.totalorder %s137, %s138
    %p149 = scmp.eq.s32.totalorder %s15, 0
    %p150 = por %p148, %p149
    %p151 = scmp.ne.s32.totalorder %s137, %s138
    %p152 = scmp.eq.s32.totalorder %s16, 3
    %p153 = por %p151, %p152
    %p155 = scmp.ne.s32.totalorder %s138, %s154
    %p156 = scmp.eq.s32.totalorder %s16, 0
    %p157 = por %p155, %p156
    %p158 = scmp.le.s32.totalorder 1, %s10
    %p159 = scmp.lt.s32.totalorder %s10, 5
    %p160 = pnand %p158, %p159
    %p161 = pneg %p160
    // Predicated region
    $region9: #{dectm_forward.5} parent=5 // pred_check
      _
    $region10: #{dectm_forward.5} parent=5 // pred_check_branch
      %163 = sbr.rel (%p160) target = $region12
    $region11: #{dectm_forward.5} parent=5 // pred_region
      %s164 = ssub.s32 %s10, 1
      // Predicated region
      $region13: #{dectm_forward.5} parent=11 // pred_check
        %p165 = pneg %p103
      $region14: #{dectm_forward.5} parent=11 // pred_check_branch
        %167 = sbr.rel (%p165) target = $region16
      $region15: #{dectm_forward.5} parent=11 // pred_region
        _
      $region16: #{dectm_forward.5} parent=11 // pred_fallthru
        _
      // Predicated region
      $region17: #{dectm_forward.5} parent=11 // pred_check
        %p168 = pneg %p124
      $region18: #{dectm_forward.5} parent=11 // pred_check_branch
        %170 = sbr.rel (%p168) target = $region20
      $region19: #{dectm_forward.5} parent=11 // pred_region
        _
      $region20: #{dectm_forward.5} parent=11 // pred_fallthru
        _
    $region12: #{dectm_forward.5} parent=5 // pred_fallthru
      _
    %p171 = scmp.lt.s32.totalorder %s10, 4
    // Predicated region
    $region21: #{dectm_forward.5} parent=5 // pred_check
      %p172 = pneg %p171
    $region22: #{dectm_forward.5} parent=5 // pred_check_branch
      %174 = sbr.rel (%p172) target = $region24
    $region23: #{dectm_forward.5} parent=5 // pred_region
      // Predicated region
      $region25: #{dectm_forward.5} parent=23 // pred_check
        %p175 = pneg %p46
      $region26: #{dectm_forward.5} parent=23 // pred_check_branch
        %177 = sbr.rel (%p175) target = $region28
      $region27: #{dectm_forward.5} parent=23 // pred_region
        %s178 = smul.u32 %s17, 2
        %s179 = sadd.s32 %s178, %s18
        %p180 = scmp.lt.s32.totalorder %s179, 3
        %s181 = scalar_select %p180, %s179, 3
        %s182 = smul.addr %s181, 4
        %s183 = scalar_lea.vmem %s0, %s182
        %s184 = smul.u32 %s17, 2
        %s185 = sadd.s32 %s184, %s18
      $region28: #{dectm_forward.5} parent=23 // pred_fallthru
        _
      // Predicated region
      $region29: #{dectm_forward.5} parent=23 // pred_check
        %p186 = pneg %p76
      $region30: #{dectm_forward.5} parent=23 // pred_check_branch
        %188 = sbr.rel (%p186) target = $region32
      $region31: #{dectm_forward.5} parent=23 // pred_region
        %s189 = smul.u32 %s17, 2
        %s190 = sadd.s32 %s189, %s18
        %p191 = scmp.lt.s32.totalorder %s190, 3
        %s192 = scalar_select %p191, %s190, 3
        %s193 = smul.addr %s192, 8
        %s194 = scalar_lea.vmem %s1, %s193
        %s195 = smul.u32 %s17, 2
        %s196 = sadd.s32 %s195, %s18
      $region32: #{dectm_forward.5} parent=23 // pred_fallthru
        _
    $region24: #{dectm_forward.5} parent=5 // pred_fallthru
      _
    %p197 = scmp.le.s32.totalorder 1, %s10
    %p198 = scmp.lt.s32.totalorder %s10, 5
    %p199 = pnand %p197, %p198
    %p200 = pneg %p199
    // Predicated region
    $region33: #{dectm_forward.5} parent=5 // pred_check
      _
    $region34: #{dectm_forward.5} parent=5 // pred_check_branch
      %202 = sbr.rel (%p199) target = $region36
    $region35: #{dectm_forward.5} parent=5 // pred_region
      %s203 = ssub.s32 %s10, 1
      %s204 = smul.u32 %s19, 2
      %s205 = sadd.s32 %s204, %s20
      %p206 = scmp.lt.s32.totalorder %s205, 3
      %s207 = scalar_select %p206, %s205, 3
      %s208 = smul.addr %s207, 4
      %s209 = scalar_lea.vmem %s0, %s208
      %p210 = pneg %p52
      %p211 = pneg %p49
      %s212 = smul.u32 %s19, 2
      %s213 = sadd.s32 %s212, %s20
      %p214 = scmp.lt.s32.totalorder %s213, 3
      %s215 = scalar_select %p214, %s213, 3
      %s216 = smul.addr %s215, 8
      %s217 = scalar_lea.vmem %s1, %s216
      %p218 = pneg %p82
      %p219 = pneg %p79
      %p220 = pneg %p103
      %p221 = pneg %p100
      %p222 = pneg %p124
      %p223 = pneg %p121
      %p224 = pneg %p150
      %p225 = pneg %p147
      %p226 = scmp.lt.s32.totalorder %s19, 1
      %s227 = scalar_select %p226, %s19, 1
      %s228 = smul.addr %s227, 8
      %s229 = scalar_lea.vmem %s4, %s228
      %s230 = smul.u32 %s19, 2
      %s231 = sadd.s32 %s230, %s20
      %p232 = scmp.lt.s32.totalorder %s231, 3
      %s233 = scalar_select %p232, %s231, 3
      %s234 = smul.addr %s233, 4
      %s235 = scalar_lea.vmem %s0, %s234
      %s236 = smul.u32 %s19, 2
      %s237 = sadd.s32 %s236, %s20
      %s238 = smul.u32 %s19, 2
      %s239 = sadd.s32 %s238, %s20
      %p240 = scmp.lt.s32.totalorder %s239, 3
      %s241 = scalar_select %p240, %s239, 3
      %s242 = smul.addr %s241, 8
      %s243 = scalar_lea.vmem %s1, %s242
      %s244 = smul.u32 %s19, 2
      %s245 = sadd.s32 %s244, %s20
      %p246 = scmp.lt.s32.totalorder %s19, 1
      %s247 = scalar_select %p246, %s19, 1
      %s248 = smul.addr %s247, 8
      %s249 = scalar_lea.vmem %s4, %s248
      %p251 = scmp.eq.s32.totalorder %s20, 0
      // Predicated region
      $region37: #{dectm_forward.5} parent=35 // pred_check
        %p252 = pneg %p251
      $region38: #{dectm_forward.5} parent=35 // pred_check_branch
        %254 = sbr.rel (%p252) target = $region40
      $region39: #{dectm_forward.5} parent=35 // pred_region
        %vm255 = vcmask 7168
        %256 = vst.msk [vmem:[#allocation2] sm:$0xff] %vm255, -1e+30
        %257 = vst.msk [vmem:[#allocation3] sm:$0xff] %vm255, 0.0
        %258 = vst.msk [vmem:[#allocation4] sm:$0xff] %vm255, 0.0
        %259 = vst.msk [vmem:[#allocation5] sm:$0xff] %vm255, 0.0
      $region40: #{dectm_forward.5} parent=35 // pred_fallthru
        _
      %v260 = vld [vmem:[%s243] sm:$0xff]
      %v261 = vunpack.c.0.s8 %v260
      %v262 = vunpack.c.1.s8 %v260
      %v263 = vunpack.c.2.s8 %v260
      %v264 = vunpack.c.3.s8 %v260
      %v265 = vcvt.s32.f32 %v261
      %v266 = vcvt.s32.f32 %v262
      %v267 = vcvt.s32.f32 %v263
      %v268 = vcvt.s32.f32 %v264
      %v269 = vmul.f32 %v265, %v265
      %v270 = vmul.f32 %v266, %v266
      %v271 = vmul.f32 %v267, %v267
      %v272 = vmul.f32 %v268, %v268
      %v273 = vadd.f32 %v269, %v270
      %v274 = vadd.f32 %v273, %v271
      %v275 = vadd.f32 %v274, %v272
      %v276 = vrot.slane %v275, 4
      %v277 = vadd.f32 %v275, %v276
      %v278 = vrot.slane %v277, 2
      %v279 = vadd.f32 %v277, %v278
      %v280 = vrot.slane %v279, 1
      %v281 = vadd.f32 %v279, %v280
      %v282 = vmax.f32 %v281, 1e-24
      %v283 = vrsqrt.pop %v282
      %v284 = vmul.f32 %v265, %v283
      %v285 = vmul.f32 %v266, %v283
      %v286 = vmul.f32 %v267, %v283
      %v287 = vmul.f32 %v268, %v283
      %v288 = vpack.c.bf16 %v285, %v284
      %v289 = vpack.c.bf16 %v287, %v286
      %v290 = vld [vmem:[%s2] sm:$0xf]
      %vm291 = vcmask 261120
      %v293 = vsel %vm291, %v290, 0
      %295 = vmatprep.subr.bf16.mxu0 0
      %296 = vmatpush1.bf16.msra.mxu0 %v288
      %297 = vmatprep.subr.bf16.mxu0 0
      %298 = vmatpush1.bf16.msra.mxu0 %v289
      %299 = vmatprep.subr.bf16.mxu0 0
      %300 = vmatpush1.bf16.msra.mxu0 0
      %301 = vmatprep.subr.bf16.mxu0 0
      %302 = vmatpush1.bf16.msra.mxu0 0
      %303 = vmatprep.subr.bf16.mxu0 0
      %304 = vmatpush1.bf16.msra.mxu0 0
      %305 = vmatprep.subr.bf16.mxu0 0
      %306 = vmatpush1.bf16.msra.mxu0 0
      %307 = vmatprep.subr.bf16.mxu0 0
      %308 = vmatpush1.bf16.msra.mxu0 0
      %309 = vmatprep.subr.bf16.mxu0 0
      %310 = vmatpush1.bf16.msra.mxu0 0
      %311 = vmatprep.subr.bf16.mxu0 0
      %312 = vmatpush1.bf16.msra.mxu0 0
      %313 = vmatprep.subr.bf16.mxu0 0
      %314 = vmatpush1.bf16.msra.mxu0 0
      %315 = vmatprep.subr.bf16.mxu0 0
      %316 = vmatpush1.bf16.msra.mxu0 0
      %317 = vmatprep.subr.bf16.mxu0 0
      %318 = vmatpush1.bf16.msra.mxu0 0
      %319 = vmatprep.subr.bf16.mxu0 0
      %320 = vmatpush1.bf16.msra.mxu0 0
      %321 = vmatprep.subr.bf16.mxu0 0
      %322 = vmatpush1.bf16.msra.mxu0 0
      %323 = vmatprep.subr.bf16.mxu0 0
      %324 = vmatpush1.bf16.msra.mxu0 0
      %325 = vmatprep.subr.bf16.mxu0 0
      %326 = vmatpush1.bf16.msra.mxu0 0
      %327 = vmatprep.mubr.bf16.mxu0 0
      %328 = vmatmul.mubr.bf16.gmra.mrb[0].mxu0 %v293
      %v329 = vpop.f32.mrb[0].mxu0
      %v330 = vadd.f32 0.0, %v329
      %v331 = vpop.f32.mrb[0].mxu0
      %v332 = vpop.f32.mrb[0].mxu0
      %v333 = vpop.f32.mrb[0].mxu0
      %334 = vdwg.mxu0
      %v335 = vld [vmem:[%s3] sm:$0x1]
      %v337 = vsel %vm291, %v335, 0
      %339 = vmatprep.subr.bf16.mxu0 0
      %340 = vmatpush1.bf16.msra.mxu0 %v288
      %341 = vmatprep.subr.bf16.mxu0 0
      %342 = vmatpush1.bf16.msra.mxu0 %v289
      %343 = vmatprep.subr.bf16.mxu0 0
      %344 = vmatpush1.bf16.msra.mxu0 0
      %345 = vmatprep.subr.bf16.mxu0 0
      %346 = vmatpush1.bf16.msra.mxu0 0
      %347 = vmatprep.subr.bf16.mxu0 0
      %348 = vmatpush1.bf16.msra.mxu0 0
      %349 = vmatprep.subr.bf16.mxu0 0
      %350 = vmatpush1.bf16.msra.mxu0 0
      %351 = vmatprep.subr.bf16.mxu0 0
      %352 = vmatpush1.bf16.msra.mxu0 0
      %353 = vmatprep.subr.bf16.mxu0 0
      %354 = vmatpush1.bf16.msra.mxu0 0
      %355 = vmatprep.subr.bf16.mxu0 0
      %356 = vmatpush1.bf16.msra.mxu0 0
      %357 = vmatprep.subr.bf16.mxu0 0
      %358 = vmatpush1.bf16.msra.mxu0 0
      %359 = vmatprep.subr.bf16.mxu0 0
      %360 = vmatpush1.bf16.msra.mxu0 0
      %361 = vmatprep.subr.bf16.mxu0 0
      %362 = vmatpush1.bf16.msra.mxu0 0
      %363 = vmatprep.subr.bf16.mxu0 0
      %364 = vmatpush1.bf16.msra.mxu0 0
      %365 = vmatprep.subr.bf16.mxu0 0
      %366 = vmatpush1.bf16.msra.mxu0 0
      %367 = vmatprep.subr.bf16.mxu0 0
      %368 = vmatpush1.bf16.msra.mxu0 0
      %369 = vmatprep.subr.bf16.mxu0 0
      %370 = vmatpush1.bf16.msra.mxu0 0
      %371 = vmatprep.mubr.bf16.mxu0 0
      %372 = vmatmul.mubr.bf16.gmra.mrb[0].mxu0 %v337
      %v373 = vpop.f32.mrb[0].mxu0
      %v374 = vadd.f32 0.0, %v373
      %v375 = vpop.f32.mrb[0].mxu0
      %v376 = vpop.f32.mrb[0].mxu0
      %v377 = vpop.f32.mrb[0].mxu0
      %378 = vdwg.mxu0
      %v379 = vmul.f32 %v330, %v330
      %v380 = vrot.slane %v379, 4
      %v381 = vadd.f32 %v379, %v380
      %v382 = vrot.slane %v381, 2
      %v383 = vadd.f32 %v381, %v382
      %v384 = vrot.slane %v383, 1
      %v385 = vadd.f32 %v383, %v384
      %v386 = vrcp.pop 8.0
      %v387 = vmul.f32 %v385, %v386
      %v388 = vmul.f32 %v374, %v374
      %v389 = vsub.f32 %v387, %v388
      %v390 = vmax.f32 %v389, 0.0
      %v391 = vlaneseq
      %v392 = vshrl.u32 %v391, 7
      %v393 = vsub.s32 0, %v392
      %v394 = vrot.slane %v374, %v393
      %v395 = vsub.f32 %v330, %v394
      %v396 = vadd.f32 %v390, 0.001
      %v397 = vrsqrt.pop %v396
      %v398 = vlaneseq
      %v399 = vshrl.u32 %v398, 7
      %v400 = vsub.s32 0, %v399
      %v401 = vrot.slane %v397, %v400
      %v402 = vmul.f32 %v395, %v401
      %s403 = smul.u32 %s19, 2
      %s404 = sadd.s32 %s403, %s20
      %s405 = smul.u32 %s404, 128
      %v406 = vlaneseq
      %v407 = vand.u32 %v406, 127
      %v408 = vstv %s405
      %v409 = vadd.s32 %v408, %v407
      %vm410 = vcmp.lt.s32.totalorder %v409, 500
      %v411 = vsel %vm410, 1, 0
      %vm412 = vcmp.eq.s32.totalorder %v411, 1
      %v413 = vsel %vm412, %v402, -1e+30
      %v414 = vld [vmem:[#allocation2] sm:$0xff]
      %415 = vmax.xlane.f32.xlu0 %v413
      %v416 = vpop.xlane.xlu0 %415
      %v417 = vmax.f32 %v414, %v416
      %v418 = vsub.f32 %v414, %v417
      %v419 = vmul.f32 %v418, 1.442695
      %v420 = vpow.pop %v419
      %v421 = vld [vmem:[#allocation3] sm:$0xff]
      %v422 = vmul.f32 %v421, %v420
      %424 = vset.pattern.permute.xlu0 0
      %425 = vperm.xlu0 %424, %v417
      %v426 = vpop.permute.xlu0 %425
      %v428 = vsub.f32 %v413, %v426
      %v429 = vmul.f32 %v428, 1.442695
      %v430 = vpow.pop %v429
      %431 = vadd.xlane.f32.xlu0 %v430
      %v432 = vpop.xlane.xlu0 %431
      %v433 = vadd.f32 %v422, %v432
      %vm434 = vcmask 7168
      %435 = vst.msk [vmem:[#allocation3] sm:$0xff] %vm434, %v433
      %436 = vst.msk [vmem:[#allocation2] sm:$0xff] %vm434, %v417
      %v437 = vld [vmem:[%s235] sm:$0xf]
      %v438 = vld [vmem:[#allocation4] sm:$0xff]
      %v439 = vunpack.c.l.bf16 %v437
      %v440 = vmul.f32 %v439, %v402
      %441 = vadd.xlane.f32.xlu0 %v440
      %v442 = vpop.xlane.xlu0 %441
      %v443 = vadd.f32 %v438, %v442
      %444 = vst.msk [vmem:[#allocation4] sm:$0xff] %vm434, %v443
      %v445 = vld [vmem:[#allocation5] sm:$0xff]
      %446 = vadd.xlane.f32.xlu0 %v439
      %v447 = vpop.xlane.xlu0 %446
      %v448 = vadd.f32 %v445, %v447
      %449 = vst.msk [vmem:[#allocation5] sm:$0xff] %vm434, %v448
      %p450 = scmp.eq.s32.totalorder %s20, 1
      // Predicated region
      $region41: #{dectm_forward.5} parent=35 // pred_check
        %p451 = pneg %p450
      $region42: #{dectm_forward.5} parent=35 // pred_check_branch
        %453 = sbr.rel (%p451) target = $region44
      $region43: #{dectm_forward.5} parent=35 // pred_region
        %v454 = vld [vmem:[#allocation2] sm:$0xff]
        %v455 = vld [vmem:[#allocation3] sm:$0xff]
        %v456 = vld [vmem:[#allocation4] sm:$0xff]
        %v457 = vld [vmem:[#allocation5] sm:$0xff]
        %459 = vrot.lane.b32.xlu0 %v455, 1
        %v460 = vpop.permute.xlu0 %459
        %463 = vrot.lane.b32.xlu0 %v456, 2
        %v464 = vpop.permute.xlu0 %463
        %467 = vrot.lane.b32.xlu0 %v457, 3
        %v468 = vpop.permute.xlu0 %467
        %v470 = vsel %vm434, %v454, %v460
        %vm471 = vcmask 15360
        %v472 = vsel %vm471, %v470, %v464
        %vm473 = vcmask 23552
        %v474 = vsel %vm473, %v472, %v468
        %vm475 = vcmask 31744
        %476 = vst.msk [vmem:[%s249] sm:$0xff] %vm475, %v474
      $region44: #{dectm_forward.5} parent=35 // pred_fallthru
        _
      %p477 = scmp.lt.s32.totalorder %s19, 1
      %s478 = scalar_select %p477, %s19, 1
      %s479 = smul.addr %s478, 8
      %s480 = scalar_lea.vmem %s4, %s479
      // Predicated region
      $region45: #{dectm_forward.5} parent=35 // pred_check
        %p481 = pneg %p147
      $region46: #{dectm_forward.5} parent=35 // pred_check_branch
        %483 = sbr.rel (%p481) target = $region48
      $region47: #{dectm_forward.5} parent=35 // pred_region
        _
      $region48: #{dectm_forward.5} parent=35 // pred_fallthru
        _
    $region36: #{dectm_forward.5} parent=5 // pred_fallthru
      _
    %p484 = scmp.le.s32.totalorder 2, %s10
    // Predicated region
    $region49: #{dectm_forward.5} parent=5 // pred_check
      %p485 = pneg %p484
    $region50: #{dectm_forward.5} parent=5 // pred_check_branch
      %487 = sbr.rel (%p485) target = $region52
    $region51: #{dectm_forward.5} parent=5 // pred_region
      %s488 = ssub.s32 %s10, 2
      // Predicated region
      $region53: #{dectm_forward.5} parent=51 // pred_check
        %p489 = pneg %p153
      $region54: #{dectm_forward.5} parent=51 // pred_check_branch
        %491 = sbr.rel (%p489) target = $region56
      $region55: #{dectm_forward.5} parent=51 // pred_region
        %p492 = scmp.lt.s32.totalorder %s21, 1
        %s493 = scalar_select %p492, %s21, 1
        %s494 = smul.addr %s493, 8
        %s495 = scalar_lea.vmem %s4, %s494
      $region56: #{dectm_forward.5} parent=51 // pred_fallthru
        _
    $region52: #{dectm_forward.5} parent=5 // pred_fallthru
      _
  $region6: #{dectm_forward.5} parent=0 // loop_footer
    %s14 = sadd.s32 1, %s10
  $region7: #{dectm_forward.5} parent=0 // loop_footer_branch
    %9 = sbr.rel target = $region3
  $region8: #{dectm_forward.5} parent=0 // loop_exit
    _

</llo_original>
